<compile_context>
chip_gen: v6e
topology: v6e:2x2x1
jax: 0.10.0
libtpu: 0.0.40
codegen_flags: <defaults>
</compile_context>

<pallas_src>
import functools

import jax
import jax.numpy as jnp
from jax import lax
from jax.experimental import pallas as pl
from jax.experimental.pallas import tpu as pltpu


# Tap order for the 3x3 convs (dy, dx).  Must match both the weight reshape in
# the wrapper and the order of the per-tap edge-mask rows.
_OFFSETS = tuple((dy, dx) for dy in (-1, 0, 1) for dx in (-1, 0, 1))


def _dpcb_kernel(x0_ref, x1_ref, masks_ref,
                 w1a_ref, b1a_ref, w1b_ref, b1b_ref,
                 w2a_ref, b2a_ref, w2b_ref, b2b_ref,
                 out0_ref, out1_ref, tap_ref, *, W):
    def lrelu(v):
        return jnp.where(v > 0, v, 0.2 * v)

    x0 = x0_ref[0]                       # (C1, L) f32
    x1 = x1_ref[0]                       # (C2, L) f32
    masks = masks_ref[...]               # (8, L)  f32 -- hoisted edge masks
    L = x0.shape[1]
    mxu_dtype = w1a_ref.dtype            # matmul operand dtype (bf16 or f32)

    def conv3x3(x, w_ref, b_ref):
        # Stage the 9 taps directly into the reused (9*C, L) VMEM scratch:
        # XLU lane rotations + one mask multiply per edge tap, then a single
        # MXU matmul with K = 9*C.  Bias added once to the f32 result.
        C = x.shape[0]
        mrow = 0
        for idx, (dy, dx) in enumerate(_OFFSETS):
            s = dy * W + dx
            t = x if s == 0 else pltpu.roll(x, shift=(-s) % L, axis=1)
            if not (dy == 0 and dx == 0):
                t = t * masks[mrow:mrow + 1, :]
                mrow += 1
            tap_ref[idx * C:(idx + 1) * C, :] = t.astype(tap_ref.dtype)
        z = tap_ref[...]                                       # (9*C, L)
        if z.dtype != mxu_dtype:
            z = z.astype(mxu_dtype)
        return jnp.dot(w_ref[...], z,
                       preferred_element_type=jnp.float32) + b_ref[...]

    def conv1x1(x, w_ref, b_ref):
        return jnp.dot(w_ref[...], x.astype(mxu_dtype),
                       preferred_element_type=jnp.float32) + b_ref[...]

    # body1: conv3x3 -> LeakyReLU(0.2) -> conv3x3
    f1 = conv3x3(lrelu(conv3x3(x0, w1a_ref, b1a_ref)), w1b_ref, b1b_ref)
    # body2: conv1x1 -> LeakyReLU(0.2) -> conv1x1
    f2 = conv1x1(lrelu(conv1x1(x1, w2a_ref, b2a_ref)), w2b_ref, b2b_ref)

    # Residual combine -- all lane-dense f32 elementwise + dense stores.
    out0_ref[0] = x0 + f1 * f2
    out1_ref[0] = x1 + f2


def _pick_vmem_limit(c1, c2, L, stage_bytes):
    """Per-step VMEM budget derived from shapes, clamped to 75% of physical."""
    act = max(c1, c2) * L * 4
    est = (8 * act                         # x0, x1, out0, out1 double-buffered
           + 9 * max(c1, c2) * L * stage_bytes   # tap staging scratch
           + 8 * act                       # live temporaries (taps, f1, f2, ...)
           + (1 << 20))                    # weights / misc headroom
    try:
        cap = int(pltpu.get_tpu_info().vmem_capacity_bytes)
    except Exception:
        cap = 64 * 1024 * 1024             # conservative (v7x per-core VMEM)
    return int(min(max(est, 32 * 1024 * 1024), int(0.75 * cap)))


def dpcb_forward(x0, x1, params, *, compute_dtype=jnp.bfloat16):
    """x0: (N, nf1, H, W), x1: (N, nf2, H, W) in PyTorch NCHW. Returns same."""
    N, C1, H, W = x0.shape
    C2 = x1.shape[1]
    assert x1.shape == (N, C2, H, W) and C1 == C2   # DAN uses DPCB(nf, nf)
    L = H * W

    w1a, b1a, w1b, b1b, w2a, b2a, w2b, b2b = params

    compute_bytes = jnp.dtype(compute_dtype).itemsize
    # Keep the tap-staging scratch in the MXU dtype only when the per-tap row
    # block (C) is aligned to the packed sublane tile; otherwise stage in f32
    # (stores stay tile-aligned) and cast right before the matmul.
    packed_sublanes = 32 // compute_bytes
    stage_dtype = compute_dtype if (C1 % packed_sublanes == 0) else jnp.float32
    stage_bytes = jnp.dtype(stage_dtype).itemsize

    # Layout glue: activations are reshaped only (no NCHW<->NHWC transpose, no
    # padding copies); 3x3 weights (O, I, kh, kw) -> (O, 9*I) in tap order.
    x0f = x0.reshape(N, C1, L)
    x1f = x1.reshape(N, C2, L)
    w1a_m = jnp.transpose(w1a, (0, 2, 3, 1)).reshape(C1, 9 * C1).astype(compute_dtype)
    w1b_m = jnp.transpose(w1b, (0, 2, 3, 1)).reshape(C1, 9 * C1).astype(compute_dtype)
    w2a_m = w2a.reshape(C1, C2).astype(compute_dtype)
    w2b_m = w2b.reshape(C1, C1).astype(compute_dtype)
    b1a_c = b1a.reshape(C1, 1).astype(jnp.float32)
    b1b_c = b1b.reshape(C1, 1).astype(jnp.float32)
    b2a_c = b2a.reshape(C1, 1).astype(jnp.float32)
    b2b_c = b2b.reshape(C1, 1).astype(jnp.float32)

    # Per-tap {0,1} edge masks (8 masked taps, center tap needs none), built
    # once here so the kernel does zero integer compares / logical ANDs.
    pid = jnp.arange(L, dtype=jnp.int32)
    row = pid // W
    col = pid % W
    rows = []
    for (dy, dx) in _OFFSETS:
        if dy == 0 and dx == 0:
            continue
        m = jnp.ones((L,), jnp.float32)
        if dy == -1:
            m = m * (row > 0)
        elif dy == 1:
            m = m * (row < H - 1)
        if dx == -1:
            m = m * (col > 0)
        elif dx == 1:
            m = m * (col < W - 1)
        rows.append(m)
    masks = jnp.stack(rows, axis=0).astype(jnp.float32)        # (8, L)

    def full(a):
        nd = a.ndim
        return pl.BlockSpec(a.shape, lambda n, _nd=nd: (0,) * _nd)

    kern = functools.partial(_dpcb_kernel, W=W)

    out0, out1 = pl.pallas_call(
        kern,
        out_shape=(jax.ShapeDtypeStruct((N, C1, L), jnp.float32),
                   jax.ShapeDtypeStruct((N, C1, L), jnp.float32)),
        grid_spec=pltpu.PrefetchScalarGridSpec(
            num_scalar_prefetch=0,
            grid=(N,),
            in_specs=[
                pl.BlockSpec((1, C1, L), lambda n: (n, 0, 0)),
                pl.BlockSpec((1, C2, L), lambda n: (n, 0, 0)),
                full(masks),
                full(w1a_m), full(b1a_c), full(w1b_m), full(b1b_c),
                full(w2a_m), full(b2a_c), full(w2b_m), full(b2b_c),
            ],
            out_specs=[
                pl.BlockSpec((1, C1, L), lambda n: (n, 0, 0)),
                pl.BlockSpec((1, C1, L), lambda n: (n, 0, 0)),
            ],
            scratch_shapes=[pltpu.VMEM((9 * C1, L), stage_dtype)],
        ),
        compiler_params=pltpu.CompilerParams(
            dimension_semantics=("parallel",),
            vmem_limit_bytes=_pick_vmem_limit(C1, C2, L, stage_bytes)),
    )(x0f, x1f, masks,
      w1a_m, b1a_c, w1b_m, b1b_c, w2a_m, b2a_c, w2b_m, b2b_c)

    return [out0.reshape(N, C1, H, W), out1.reshape(N, C1, H, W)]


def init_params(key, nf1, nf2, k1=3):
    """Weights in PyTorch layout: 3x3 convs OIHW, 1x1 convs (out, in)."""
    ks = jax.random.split(key, 8)
    s = 0.1
    w1a = jax.random.normal(ks[0], (nf1, nf1, k1, k1), jnp.float32) * s
    b1a = jax.random.normal(ks[1], (nf1,), jnp.float32) * s
    w1b = jax.random.normal(ks[2], (nf1, nf1, k1, k1), jnp.float32) * s
    b1b = jax.random.normal(ks[3], (nf1,), jnp.float32) * s
    w2a = jax.random.normal(ks[4], (nf1, nf2), jnp.float32) * s    # 1x1 conv
    b2a = jax.random.normal(ks[5], (nf1,), jnp.float32) * s
    w2b = jax.random.normal(ks[6], (nf1, nf1), jnp.float32) * s    # 1x1 conv
    b2b = jax.random.normal(ks[7], (nf1,), jnp.float32) * s
    return (w1a, b1a, w1b, b1b, w2a, b2a, w2b, b2b)


def _reference(x0, x1, params):
    """Pure-JAX reference matching the PyTorch forward (cross-correlation)."""
    w1a, b1a, w1b, b1b, w2a, b2a, w2b, b2b = params

    def conv(x_nchw, w_oihw, b, pad):
        y = lax.conv_general_dilated(
            x_nchw, w_oihw, (1, 1), [(pad, pad), (pad, pad)],
            dimension_numbers=('NCHW', 'OIHW', 'NCHW'))
        return y + b.reshape(1, -1, 1, 1)

    def lrelu(v):
        return jnp.where(v > 0, v, 0.2 * v)

    f1 = conv(lrelu(conv(x0, w1a, b1a, 1)), w1b, b1b, 1)
    f2 = conv(lrelu(conv(x1, w2a[:, :, None, None], b2a, 0)),
              w2b[:, :, None, None], b2b, 0)
    return [x0 + f1 * f2, x1 + f2]


if __name__ == "__main__":
    key = jax.random.PRNGKey(0)
    kx0, kx1, kp = jax.random.split(key, 3)

    N, nf1, nf2, H, W = 2, 8, 8, 16, 16
    x0 = jax.random.normal(kx0, (N, nf1, H, W), jnp.float32)
    x1 = jax.random.normal(kx1, (N, nf2, H, W), jnp.float32)
    params = init_params(kp, nf1, nf2)

    ref = _reference(x0, x1, params)

    # Exact path (f32 MXU operands) -- matches the PyTorch module tightly.
    out = jax.block_until_ready(
        dpcb_forward(x0, x1, params, compute_dtype=jnp.float32))
    for o, r in zip(out, ref):
        err = float(jnp.max(jnp.abs(o - r)))
        assert jnp.allclose(o, r, atol=1e-4, rtol=1e-4), f"f32 max abs err {err}"

    # Fast path (default): bf16 MXU operands with f32 accumulation.
    out_bf = jax.block_until_ready(dpcb_forward(x0, x1, params))
    for o, r in zip(out_bf, ref):
        err = float(jnp.max(jnp.abs(o - r)))
        assert jnp.allclose(o, r, atol=5e-2, rtol=5e-2), f"bf16 max abs err {err}"

    print("KERNEL_OK")
</pallas_src>

<mosaic_0001>
module attributes {stable_mosaic.version = 11 : i64} {
  func.func @_dpcb_kernel(%arg0: i32, %arg1: memref<1x8x256xf32, #tpu.memory_space<vmem>>, %arg2: memref<1x8x256xf32, #tpu.memory_space<vmem>>, %arg3: memref<8x256xf32, #tpu.memory_space<vmem>>, %arg4: memref<8x72xf32, #tpu.memory_space<vmem>>, %arg5: memref<8x1xf32, #tpu.memory_space<vmem>>, %arg6: memref<8x72xf32, #tpu.memory_space<vmem>>, %arg7: memref<8x1xf32, #tpu.memory_space<vmem>>, %arg8: memref<8x8xf32, #tpu.memory_space<vmem>>, %arg9: memref<8x1xf32, #tpu.memory_space<vmem>>, %arg10: memref<8x8xf32, #tpu.memory_space<vmem>>, %arg11: memref<8x1xf32, #tpu.memory_space<vmem>>, %arg12: memref<1x8x256xf32, #tpu.memory_space<vmem>>, %arg13: memref<1x8x256xf32, #tpu.memory_space<vmem>>, %arg14: memref<72x256xf32, #tpu.memory_space<vmem>>) attributes {dimension_semantics = [#tpu.dimension_semantics<parallel>], iteration_bounds = array<i64: 2>, scalar_prefetch = 0 : i64, scratch_operands = 1 : i64, tpu.core_type = #tpu.core_type<tc>, window_params = [{transform_indices = @transform_0, window_bounds = array<i64: 1, 8, 256>}, {transform_indices = @transform_1, window_bounds = array<i64: 1, 8, 256>}, {pipeline_mode = #tpu.pipeline_mode<synchronous>, transform_indices = @transform_2, window_bounds = array<i64: 8, 256>}, {pipeline_mode = #tpu.pipeline_mode<synchronous>, transform_indices = @transform_3, window_bounds = array<i64: 8, 72>}, {pipeline_mode = #tpu.pipeline_mode<synchronous>, transform_indices = @transform_4, window_bounds = array<i64: 8, 1>}, {pipeline_mode = #tpu.pipeline_mode<synchronous>, transform_indices = @transform_5, window_bounds = array<i64: 8, 72>}, {pipeline_mode = #tpu.pipeline_mode<synchronous>, transform_indices = @transform_6, window_bounds = array<i64: 8, 1>}, {pipeline_mode = #tpu.pipeline_mode<synchronous>, transform_indices = @transform_7, window_bounds = array<i64: 8, 8>}, {pipeline_mode = #tpu.pipeline_mode<synchronous>, transform_indices = @transform_8, window_bounds = array<i64: 8, 1>}, {pipeline_mode = #tpu.pipeline_mode<synchronous>, transform_indices = @transform_9, window_bounds = array<i64: 8, 8>}, {pipeline_mode = #tpu.pipeline_mode<synchronous>, transform_indices = @transform_10, window_bounds = array<i64: 8, 1>}, {transform_indices = @transform_11, window_bounds = array<i64: 1, 8, 256>}, {transform_indices = @transform_12, window_bounds = array<i64: 1, 8, 256>}]} {
    %c0 = arith.constant 0 : index
    %c0_0 = arith.constant 0 : index
    %c0_1 = arith.constant 0 : index
    %0 = vector.load %arg1[%c0, %c0_0, %c0_1] : memref<1x8x256xf32, #tpu.memory_space<vmem>>, vector<1x8x256xf32>
    %1 = vector.shape_cast %0 : vector<1x8x256xf32> to vector<8x256xf32>
    %c0_2 = arith.constant 0 : index
    %c0_3 = arith.constant 0 : index
    %c0_4 = arith.constant 0 : index
    %2 = vector.load %arg2[%c0_2, %c0_3, %c0_4] : memref<1x8x256xf32, #tpu.memory_space<vmem>>, vector<1x8x256xf32>
    %3 = vector.shape_cast %2 : vector<1x8x256xf32> to vector<8x256xf32>
    %c0_5 = arith.constant 0 : index
    %c0_6 = arith.constant 0 : index
    %4 = vector.load %arg3[%c0_5, %c0_6] : memref<8x256xf32, #tpu.memory_space<vmem>>, vector<8x256xf32>
    %c17_i32 = arith.constant 17 : i32
    %5 = tpu.dynamic_rotate %1 by %c17_i32 dim 1 : vector<8x256xf32>, i32 -> vector<8x256xf32>
    %6 = vector.extract_strided_slice %4 {offsets = [0, 0], sizes = [1, 256], strides = [1, 1]} : vector<8x256xf32> to vector<1x256xf32>
    %7 = vector.broadcast %6 : vector<1x256xf32> to vector<8x256xf32>
    %8 = arith.mulf %5, %7 : vector<8x256xf32>
    %c0_7 = arith.constant 0 : index
    %c0_8 = arith.constant 0 : index
    %9 = vector.load %arg14[%c0_7, %c0_8] : memref<72x256xf32, #tpu.memory_space<vmem>>, vector<8x256xf32>
    tpu.vector_store %arg14[%c0_7, %c0_8], %8 {strides = array<i32>} : memref<72x256xf32, #tpu.memory_space<vmem>>, vector<8x256xf32>,
    %c16_i32 = arith.constant 16 : i32
    %10 = tpu.dynamic_rotate %1 by %c16_i32 dim 1 : vector<8x256xf32>, i32 -> vector<8x256xf32>
    %11 = vector.extract_strided_slice %4 {offsets = [1, 0], sizes = [1, 256], strides = [1, 1]} : vector<8x256xf32> to vector<1x256xf32>
    %12 = vector.broadcast %11 : vector<1x256xf32> to vector<8x256xf32>
    %13 = arith.mulf %10, %12 : vector<8x256xf32>
    %c8 = arith.constant 8 : index
    %c0_9 = arith.constant 0 : index
    %14 = vector.load %arg14[%c8, %c0_9] : memref<72x256xf32, #tpu.memory_space<vmem>>, vector<8x256xf32>
    tpu.vector_store %arg14[%c8, %c0_9], %13 {strides = array<i32>} : memref<72x256xf32, #tpu.memory_space<vmem>>, vector<8x256xf32>,
    %c15_i32 = arith.constant 15 : i32
    %15 = tpu.dynamic_rotate %1 by %c15_i32 dim 1 : vector<8x256xf32>, i32 -> vector<8x256xf32>
    %16 = vector.extract_strided_slice %4 {offsets = [2, 0], sizes = [1, 256], strides = [1, 1]} : vector<8x256xf32> to vector<1x256xf32>
    %17 = vector.broadcast %16 : vector<1x256xf32> to vector<8x256xf32>
    %18 = arith.mulf %15, %17 : vector<8x256xf32>
    %c16 = arith.constant 16 : index
    %c0_10 = arith.constant 0 : index
    %19 = vector.load %arg14[%c16, %c0_10] : memref<72x256xf32, #tpu.memory_space<vmem>>, vector<8x256xf32>
    tpu.vector_store %arg14[%c16, %c0_10], %18 {strides = array<i32>} : memref<72x256xf32, #tpu.memory_space<vmem>>, vector<8x256xf32>,
    %c1_i32 = arith.constant 1 : i32
    %20 = tpu.dynamic_rotate %1 by %c1_i32 dim 1 : vector<8x256xf32>, i32 -> vector<8x256xf32>
    %21 = vector.extract_strided_slice %4 {offsets = [3, 0], sizes = [1, 256], strides = [1, 1]} : vector<8x256xf32> to vector<1x256xf32>
    %22 = vector.broadcast %21 : vector<1x256xf32> to vector<8x256xf32>
    %23 = arith.mulf %20, %22 : vector<8x256xf32>
    %c24 = arith.constant 24 : index
    %c0_11 = arith.constant 0 : index
    %24 = vector.load %arg14[%c24, %c0_11] : memref<72x256xf32, #tpu.memory_space<vmem>>, vector<8x256xf32>
    tpu.vector_store %arg14[%c24, %c0_11], %23 {strides = array<i32>} : memref<72x256xf32, #tpu.memory_space<vmem>>, vector<8x256xf32>,
    %c32 = arith.constant 32 : index
    %c0_12 = arith.constant 0 : index
    %25 = vector.load %arg14[%c32, %c0_12] : memref<72x256xf32, #tpu.memory_space<vmem>>, vector<8x256xf32>
    tpu.vector_store %arg14[%c32, %c0_12], %1 {strides = array<i32>} : memref<72x256xf32, #tpu.memory_space<vmem>>, vector<8x256xf32>,
    %c255_i32 = arith.constant 255 : i32
    %26 = tpu.dynamic_rotate %1 by %c255_i32 dim 1 : vector<8x256xf32>, i32 -> vector<8x256xf32>
    %27 = vector.extract_strided_slice %4 {offsets = [4, 0], sizes = [1, 256], strides = [1, 1]} : vector<8x256xf32> to vector<1x256xf32>
    %28 = vector.broadcast %27 : vector<1x256xf32> to vector<8x256xf32>
    %29 = arith.mulf %26, %28 : vector<8x256xf32>
    %c40 = arith.constant 40 : index
    %c0_13 = arith.constant 0 : index
    %30 = vector.load %arg14[%c40, %c0_13] : memref<72x256xf32, #tpu.memory_space<vmem>>, vector<8x256xf32>
    tpu.vector_store %arg14[%c40, %c0_13], %29 {strides = array<i32>} : memref<72x256xf32, #tpu.memory_space<vmem>>, vector<8x256xf32>,
    %c241_i32 = arith.constant 241 : i32
    %31 = tpu.dynamic_rotate %1 by %c241_i32 dim 1 : vector<8x256xf32>, i32 -> vector<8x256xf32>
    %32 = vector.extract_strided_slice %4 {offsets = [5, 0], sizes = [1, 256], strides = [1, 1]} : vector<8x256xf32> to vector<1x256xf32>
    %33 = vector.broadcast %32 : vector<1x256xf32> to vector<8x256xf32>
    %34 = arith.mulf %31, %33 : vector<8x256xf32>
    %c48 = arith.constant 48 : index
    %c0_14 = arith.constant 0 : index
    %35 = vector.load %arg14[%c48, %c0_14] : memref<72x256xf32, #tpu.memory_space<vmem>>, vector<8x256xf32>
    tpu.vector_store %arg14[%c48, %c0_14], %34 {strides = array<i32>} : memref<72x256xf32, #tpu.memory_space<vmem>>, vector<8x256xf32>,
    %c240_i32 = arith.constant 240 : i32
    %36 = tpu.dynamic_rotate %1 by %c240_i32 dim 1 : vector<8x256xf32>, i32 -> vector<8x256xf32>
    %37 = vector.extract_strided_slice %4 {offsets = [6, 0], sizes = [1, 256], strides = [1, 1]} : vector<8x256xf32> to vector<1x256xf32>
    %38 = vector.broadcast %37 : vector<1x256xf32> to vector<8x256xf32>
    %39 = arith.mulf %36, %38 : vector<8x256xf32>
    %c56 = arith.constant 56 : index
    %c0_15 = arith.constant 0 : index
    %40 = vector.load %arg14[%c56, %c0_15] : memref<72x256xf32, #tpu.memory_space<vmem>>, vector<8x256xf32>
    tpu.vector_store %arg14[%c56, %c0_15], %39 {strides = array<i32>} : memref<72x256xf32, #tpu.memory_space<vmem>>, vector<8x256xf32>,
    %c239_i32 = arith.constant 239 : i32
    %41 = tpu.dynamic_rotate %1 by %c239_i32 dim 1 : vector<8x256xf32>, i32 -> vector<8x256xf32>
    %42 = vector.extract_strided_slice %4 {offsets = [7, 0], sizes = [1, 256], strides = [1, 1]} : vector<8x256xf32> to vector<1x256xf32>
    %43 = vector.broadcast %42 : vector<1x256xf32> to vector<8x256xf32>
    %44 = arith.mulf %41, %43 : vector<8x256xf32>
    %c64 = arith.constant 64 : index
    %c0_16 = arith.constant 0 : index
    %45 = vector.load %arg14[%c64, %c0_16] : memref<72x256xf32, #tpu.memory_space<vmem>>, vector<8x256xf32>
    tpu.vector_store %arg14[%c64, %c0_16], %44 {strides = array<i32>} : memref<72x256xf32, #tpu.memory_space<vmem>>, vector<8x256xf32>,
    %c0_17 = arith.constant 0 : index
    %c0_18 = arith.constant 0 : index
    %46 = vector.load %arg14[%c0_17, %c0_18] : memref<72x256xf32, #tpu.memory_space<vmem>>, vector<72x256xf32>
    %c0_19 = arith.constant 0 : index
    %c0_20 = arith.constant 0 : index
    %47 = vector.load %arg4[%c0_19, %c0_20] : memref<8x72xf32, #tpu.memory_space<vmem>>, vector<8x72xf32>
    %cst = arith.constant dense<0.000000e+00> : vector<8x256xf32>
    %48 = tpu.matmul %47, %46, %cst {dimension_numbers = #tpu.dot_dimension_numbers<[1], [0], [0], [1], [0, 0, 1, 1], [], []>} : vector<8x72xf32>, vector<72x256xf32>, vector<8x256xf32> -> vector<8x256xf32>
    %c0_21 = arith.constant 0 : index
    %c0_22 = arith.constant 0 : index
    %49 = vector.load %arg5[%c0_21, %c0_22] : memref<8x1xf32, #tpu.memory_space<vmem>>, vector<8x1xf32>
    %50 = vector.broadcast %49 : vector<8x1xf32> to vector<8x256xf32>
    %51 = arith.addf %48, %50 : vector<8x256xf32>
    %cst_23 = arith.constant 0.000000e+00 : f32
    %52 = vector.broadcast %cst_23 : f32 to vector<8x256xf32>
    %53 = arith.cmpf ogt, %51, %52 : vector<8x256xf32>
    %cst_24 = arith.constant 2.000000e-01 : f32
    %54 = vector.broadcast %cst_24 : f32 to vector<8x256xf32>
    %55 = arith.mulf %54, %51 : vector<8x256xf32>
    %56 = arith.select %53, %51, %55 : vector<8x256xi1>, vector<8x256xf32>
    %c17_i32_25 = arith.constant 17 : i32
    %57 = tpu.dynamic_rotate %56 by %c17_i32_25 dim 1 : vector<8x256xf32>, i32 -> vector<8x256xf32>
    %58 = vector.extract_strided_slice %4 {offsets = [0, 0], sizes = [1, 256], strides = [1, 1]} : vector<8x256xf32> to vector<1x256xf32>
    %59 = vector.broadcast %58 : vector<1x256xf32> to vector<8x256xf32>
    %60 = arith.mulf %57, %59 : vector<8x256xf32>
    %c0_26 = arith.constant 0 : index
    %c0_27 = arith.constant 0 : index
    %61 = vector.load %arg14[%c0_26, %c0_27] : memref<72x256xf32, #tpu.memory_space<vmem>>, vector<8x256xf32>
    tpu.vector_store %arg14[%c0_26, %c0_27], %60 {strides = array<i32>} : memref<72x256xf32, #tpu.memory_space<vmem>>, vector<8x256xf32>,
    %c16_i32_28 = arith.constant 16 : i32
    %62 = tpu.dynamic_rotate %56 by %c16_i32_28 dim 1 : vector<8x256xf32>, i32 -> vector<8x256xf32>
    %63 = vector.extract_strided_slice %4 {offsets = [1, 0], sizes = [1, 256], strides = [1, 1]} : vector<8x256xf32> to vector<1x256xf32>
    %64 = vector.broadcast %63 : vector<1x256xf32> to vector<8x256xf32>
    %65 = arith.mulf %62, %64 : vector<8x256xf32>
    %c8_29 = arith.constant 8 : index
    %c0_30 = arith.constant 0 : index
    %66 = vector.load %arg14[%c8_29, %c0_30] : memref<72x256xf32, #tpu.memory_space<vmem>>, vector<8x256xf32>
    tpu.vector_store %arg14[%c8_29, %c0_30], %65 {strides = array<i32>} : memref<72x256xf32, #tpu.memory_space<vmem>>, vector<8x256xf32>,
    %c15_i32_31 = arith.constant 15 : i32
    %67 = tpu.dynamic_rotate %56 by %c15_i32_31 dim 1 : vector<8x256xf32>, i32 -> vector<8x256xf32>
    %68 = vector.extract_strided_slice %4 {offsets = [2, 0], sizes = [1, 256], strides = [1, 1]} : vector<8x256xf32> to vector<1x256xf32>
    %69 = vector.broadcast %68 : vector<1x256xf32> to vector<8x256xf32>
    %70 = arith.mulf %67, %69 : vector<8x256xf32>
    %c16_32 = arith.constant 16 : index
    %c0_33 = arith.constant 0 : index
    %71 = vector.load %arg14[%c16_32, %c0_33] : memref<72x256xf32, #tpu.memory_space<vmem>>, vector<8x256xf32>
    tpu.vector_store %arg14[%c16_32, %c0_33], %70 {strides = array<i32>} : memref<72x256xf32, #tpu.memory_space<vmem>>, vector<8x256xf32>,
    %c1_i32_34 = arith.constant 1 : i32
    %72 = tpu.dynamic_rotate %56 by %c1_i32_34 dim 1 : vector<8x256xf32>, i32 -> vector<8x256xf32>
    %73 = vector.extract_strided_slice %4 {offsets = [3, 0], sizes = [1, 256], strides = [1, 1]} : vector<8x256xf32> to vector<1x256xf32>
    %74 = vector.broadcast %73 : vector<1x256xf32> to vector<8x256xf32>
    %75 = arith.mulf %72, %74 : vector<8x256xf32>
    %c24_35 = arith.constant 24 : index
    %c0_36 = arith.constant 0 : index
    %76 = vector.load %arg14[%c24_35, %c0_36] : memref<72x256xf32, #tpu.memory_space<vmem>>, vector<8x256xf32>
    tpu.vector_store %arg14[%c24_35, %c0_36], %75 {strides = array<i32>} : memref<72x256xf32, #tpu.memory_space<vmem>>, vector<8x256xf32>,
    %c32_37 = arith.constant 32 : index
    %c0_38 = arith.constant 0 : index
    %77 = vector.load %arg14[%c32_37, %c0_38] : memref<72x256xf32, #tpu.memory_space<vmem>>, vector<8x256xf32>
    tpu.vector_store %arg14[%c32_37, %c0_38], %56 {strides = array<i32>} : memref<72x256xf32, #tpu.memory_space<vmem>>, vector<8x256xf32>,
    %c255_i32_39 = arith.constant 255 : i32
    %78 = tpu.dynamic_rotate %56 by %c255_i32_39 dim 1 : vector<8x256xf32>, i32 -> vector<8x256xf32>
    %79 = vector.extract_strided_slice %4 {offsets = [4, 0], sizes = [1, 256], strides = [1, 1]} : vector<8x256xf32> to vector<1x256xf32>
    %80 = vector.broadcast %79 : vector<1x256xf32> to vector<8x256xf32>
    %81 = arith.mulf %78, %80 : vector<8x256xf32>
    %c40_40 = arith.constant 40 : index
    %c0_41 = arith.constant 0 : index
    %82 = vector.load %arg14[%c40_40, %c0_41] : memref<72x256xf32, #tpu.memory_space<vmem>>, vector<8x256xf32>
    tpu.vector_store %arg14[%c40_40, %c0_41], %81 {strides = array<i32>} : memref<72x256xf32, #tpu.memory_space<vmem>>, vector<8x256xf32>,
    %c241_i32_42 = arith.constant 241 : i32
    %83 = tpu.dynamic_rotate %56 by %c241_i32_42 dim 1 : vector<8x256xf32>, i32 -> vector<8x256xf32>
    %84 = vector.extract_strided_slice %4 {offsets = [5, 0], sizes = [1, 256], strides = [1, 1]} : vector<8x256xf32> to vector<1x256xf32>
    %85 = vector.broadcast %84 : vector<1x256xf32> to vector<8x256xf32>
    %86 = arith.mulf %83, %85 : vector<8x256xf32>
    %c48_43 = arith.constant 48 : index
    %c0_44 = arith.constant 0 : index
    %87 = vector.load %arg14[%c48_43, %c0_44] : memref<72x256xf32, #tpu.memory_space<vmem>>, vector<8x256xf32>
    tpu.vector_store %arg14[%c48_43, %c0_44], %86 {strides = array<i32>} : memref<72x256xf32, #tpu.memory_space<vmem>>, vector<8x256xf32>,
    %c240_i32_45 = arith.constant 240 : i32
    %88 = tpu.dynamic_rotate %56 by %c240_i32_45 dim 1 : vector<8x256xf32>, i32 -> vector<8x256xf32>
    %89 = vector.extract_strided_slice %4 {offsets = [6, 0], sizes = [1, 256], strides = [1, 1]} : vector<8x256xf32> to vector<1x256xf32>
    %90 = vector.broadcast %89 : vector<1x256xf32> to vector<8x256xf32>
    %91 = arith.mulf %88, %90 : vector<8x256xf32>
    %c56_46 = arith.constant 56 : index
    %c0_47 = arith.constant 0 : index
    %92 = vector.load %arg14[%c56_46, %c0_47] : memref<72x256xf32, #tpu.memory_space<vmem>>, vector<8x256xf32>
    tpu.vector_store %arg14[%c56_46, %c0_47], %91 {strides = array<i32>} : memref<72x256xf32, #tpu.memory_space<vmem>>, vector<8x256xf32>,
    %c239_i32_48 = arith.constant 239 : i32
    %93 = tpu.dynamic_rotate %56 by %c239_i32_48 dim 1 : vector<8x256xf32>, i32 -> vector<8x256xf32>
    %94 = vector.extract_strided_slice %4 {offsets = [7, 0], sizes = [1, 256], strides = [1, 1]} : vector<8x256xf32> to vector<1x256xf32>
    %95 = vector.broadcast %94 : vector<1x256xf32> to vector<8x256xf32>
    %96 = arith.mulf %93, %95 : vector<8x256xf32>
    %c64_49 = arith.constant 64 : index
    %c0_50 = arith.constant 0 : index
    %97 = vector.load %arg14[%c64_49, %c0_50] : memref<72x256xf32, #tpu.memory_space<vmem>>, vector<8x256xf32>
    tpu.vector_store %arg14[%c64_49, %c0_50], %96 {strides = array<i32>} : memref<72x256xf32, #tpu.memory_space<vmem>>, vector<8x256xf32>,
    %c0_51 = arith.constant 0 : index
    %c0_52 = arith.constant 0 : index
    %98 = vector.load %arg14[%c0_51, %c0_52] : memref<72x256xf32, #tpu.memory_space<vmem>>, vector<72x256xf32>
    %c0_53 = arith.constant 0 : index
    %c0_54 = arith.constant 0 : index
    %99 = vector.load %arg6[%c0_53, %c0_54] : memref<8x72xf32, #tpu.memory_space<vmem>>, vector<8x72xf32>
    %cst_55 = arith.constant dense<0.000000e+00> : vector<8x256xf32>
    %100 = tpu.matmul %99, %98, %cst_55 {dimension_numbers = #tpu.dot_dimension_numbers<[1], [0], [0], [1], [0, 0, 1, 1], [], []>} : vector<8x72xf32>, vector<72x256xf32>, vector<8x256xf32> -> vector<8x256xf32>
    %c0_56 = arith.constant 0 : index
    %c0_57 = arith.constant 0 : index
    %101 = vector.load %arg7[%c0_56, %c0_57] : memref<8x1xf32, #tpu.memory_space<vmem>>, vector<8x1xf32>
    %102 = vector.broadcast %101 : vector<8x1xf32> to vector<8x256xf32>
    %103 = arith.addf %100, %102 : vector<8x256xf32>
    %c0_58 = arith.constant 0 : index
    %c0_59 = arith.constant 0 : index
    %104 = vector.load %arg8[%c0_58, %c0_59] : memref<8x8xf32, #tpu.memory_space<vmem>>, vector<8x8xf32>
    %cst_60 = arith.constant dense<0.000000e+00> : vector<8x256xf32>
    %105 = tpu.matmul %104, %3, %cst_60 {dimension_numbers = #tpu.dot_dimension_numbers<[1], [0], [0], [1], [0, 0, 1, 1], [], []>} : vector<8x8xf32>, vector<8x256xf32>, vector<8x256xf32> -> vector<8x256xf32>
    %c0_61 = arith.constant 0 : index
    %c0_62 = arith.constant 0 : index
    %106 = vector.load %arg9[%c0_61, %c0_62] : memref<8x1xf32, #tpu.memory_space<vmem>>, vector<8x1xf32>
    %107 = vector.broadcast %106 : vector<8x1xf32> to vector<8x256xf32>
    %108 = arith.addf %105, %107 : vector<8x256xf32>
    %cst_63 = arith.constant 0.000000e+00 : f32
    %109 = vector.broadcast %cst_63 : f32 to vector<8x256xf32>
    %110 = arith.cmpf ogt, %108, %109 : vector<8x256xf32>
    %cst_64 = arith.constant 2.000000e-01 : f32
    %111 = vector.broadcast %cst_64 : f32 to vector<8x256xf32>
    %112 = arith.mulf %111, %108 : vector<8x256xf32>
    %113 = arith.select %110, %108, %112 : vector<8x256xi1>, vector<8x256xf32>
    %c0_65 = arith.constant 0 : index
    %c0_66 = arith.constant 0 : index
    %114 = vector.load %arg10[%c0_65, %c0_66] : memref<8x8xf32, #tpu.memory_space<vmem>>, vector<8x8xf32>
    %cst_67 = arith.constant dense<0.000000e+00> : vector<8x256xf32>
    %115 = tpu.matmul %114, %113, %cst_67 {dimension_numbers = #tpu.dot_dimension_numbers<[1], [0], [0], [1], [0, 0, 1, 1], [], []>} : vector<8x8xf32>, vector<8x256xf32>, vector<8x256xf32> -> vector<8x256xf32>
    %c0_68 = arith.constant 0 : index
    %c0_69 = arith.constant 0 : index
    %116 = vector.load %arg11[%c0_68, %c0_69] : memref<8x1xf32, #tpu.memory_space<vmem>>, vector<8x1xf32>
    %117 = vector.broadcast %116 : vector<8x1xf32> to vector<8x256xf32>
    %118 = arith.addf %115, %117 : vector<8x256xf32>
    %119 = arith.mulf %103, %118 : vector<8x256xf32>
    %120 = arith.addf %1, %119 : vector<8x256xf32>
    %c0_70 = arith.constant 0 : index
    %c0_71 = arith.constant 0 : index
    %c0_72 = arith.constant 0 : index
    %121 = vector.load %arg12[%c0_70, %c0_71, %c0_72] : memref<1x8x256xf32, #tpu.memory_space<vmem>>, vector<1x8x256xf32>
    %122 = vector.shape_cast %121 : vector<1x8x256xf32> to vector<8x256xf32>
    %123 = vector.shape_cast %120 : vector<8x256xf32> to vector<1x8x256xf32>
    tpu.vector_store %arg12[%c0_70, %c0_71, %c0_72], %123 {strides = array<i32>} : memref<1x8x256xf32, #tpu.memory_space<vmem>>, vector<1x8x256xf32>,
    %124 = arith.addf %3, %118 : vector<8x256xf32>
    %c0_73 = arith.constant 0 : index
    %c0_74 = arith.constant 0 : index
    %c0_75 = arith.constant 0 : index
    %125 = vector.load %arg13[%c0_73, %c0_74, %c0_75] : memref<1x8x256xf32, #tpu.memory_space<vmem>>, vector<1x8x256xf32>
    %126 = vector.shape_cast %125 : vector<1x8x256xf32> to vector<8x256xf32>
    %127 = vector.shape_cast %124 : vector<8x256xf32> to vector<1x8x256xf32>
    tpu.vector_store %arg13[%c0_73, %c0_74, %c0_75], %127 {strides = array<i32>} : memref<1x8x256xf32, #tpu.memory_space<vmem>>, vector<1x8x256xf32>,
    return
  }
  func.func @transform_0(%arg0: i32) -> (i32, i32, i32) {
    %c0_i32 = arith.constant 0 : i32
    %c0_i32_0 = arith.constant 0 : i32
    %c0_i32_1 = arith.constant 0 : i32
    return %arg0, %c0_i32, %c0_i32_0 : i32, i32, i32
  }
  func.func @transform_1(%arg0: i32) -> (i32, i32, i32) {
    %c0_i32 = arith.constant 0 : i32
    %c0_i32_0 = arith.constant 0 : i32
    %c0_i32_1 = arith.constant 0 : i32
    return %arg0, %c0_i32, %c0_i32_0 : i32, i32, i32
  }
  func.func @transform_2(%arg0: i32) -> (i32, i32) {
    %c0_i32 = arith.constant 0 : i32
    %c0_i32_0 = arith.constant 0 : i32
    %c0_i32_1 = arith.constant 0 : i32
    return %c0_i32, %c0_i32_0 : i32, i32
  }
  func.func @transform_3(%arg0: i32) -> (i32, i32) {
    %c0_i32 = arith.constant 0 : i32
    %c0_i32_0 = arith.constant 0 : i32
    %c0_i32_1 = arith.constant 0 : i32
    return %c0_i32, %c0_i32_0 : i32, i32
  }
  func.func @transform_4(%arg0: i32) -> (i32, i32) {
    %c0_i32 = arith.constant 0 : i32
    %c0_i32_0 = arith.constant 0 : i32
    %c0_i32_1 = arith.constant 0 : i32
    return %c0_i32, %c0_i32_0 : i32, i32
  }
  func.func @transform_5(%arg0: i32) -> (i32, i32) {
    %c0_i32 = arith.constant 0 : i32
    %c0_i32_0 = arith.constant 0 : i32
    %c0_i32_1 = arith.constant 0 : i32
    return %c0_i32, %c0_i32_0 : i32, i32
  }
  func.func @transform_6(%arg0: i32) -> (i32, i32) {
    %c0_i32 = arith.constant 0 : i32
    %c0_i32_0 = arith.constant 0 : i32
    %c0_i32_1 = arith.constant 0 : i32
    return %c0_i32, %c0_i32_0 : i32, i32
  }
  func.func @transform_7(%arg0: i32) -> (i32, i32) {
    %c0_i32 = arith.constant 0 : i32
    %c0_i32_0 = arith.constant 0 : i32
    %c0_i32_1 = arith.constant 0 : i32
    return %c0_i32, %c0_i32_0 : i32, i32
  }
  func.func @transform_8(%arg0: i32) -> (i32, i32) {
    %c0_i32 = arith.constant 0 : i32
    %c0_i32_0 = arith.constant 0 : i32
    %c0_i32_1 = arith.constant 0 : i32
    return %c0_i32, %c0_i32_0 : i32, i32
  }
  func.func @transform_9(%arg0: i32) -> (i32, i32) {
    %c0_i32 = arith.constant 0 : i32
    %c0_i32_0 = arith.constant 0 : i32
    %c0_i32_1 = arith.constant 0 : i32
    return %c0_i32, %c0_i32_0 : i32, i32
  }
  func.func @transform_10(%arg0: i32) -> (i32, i32) {
    %c0_i32 = arith.constant 0 : i32
    %c0_i32_0 = arith.constant 0 : i32
    %c0_i32_1 = arith.constant 0 : i32
    return %c0_i32, %c0_i32_0 : i32, i32
  }
  func.func @transform_11(%arg0: i32) -> (i32, i32, i32) {
    %c0_i32 = arith.constant 0 : i32
    %c0_i32_0 = arith.constant 0 : i32
    %c0_i32_1 = arith.constant 0 : i32
    return %arg0, %c0_i32, %c0_i32_0 : i32, i32, i32
  }
  func.func @transform_12(%arg0: i32) -> (i32, i32, i32) {
    %c0_i32 = arith.constant 0 : i32
    %c0_i32_0 = arith.constant 0 : i32
    %c0_i32_1 = arith.constant 0 : i32
    return %arg0, %c0_i32, %c0_i32_0 : i32, i32, i32
  }
}

</mosaic_0001>

<llo_original>
// kernel: tpu_custom_call.1
$region0: #{tpu_custom_call.1}
  #allocation0 [shape = 'u32[]', space=smem, size = 0x4, offset = 0x4, fixed_abs, tag = 'smem constant byte address 0x4 - core index']
  #allocation1 [shape = 'u32[144,128]{1,0:T(1,128)}', space=vmem, size = 0x12000, scoped, tag = 'internal scratch']
  #allocation2 [shape = 'f32[72,256]{1,0:T(8,128)}', space=vmem, size = 0x12000, scoped, tag = 'scratch operand']
  %s0 = inlined_call_operand.vmem [shape: f32[2,8,256], index: 0, kind: input, shape index: {}]
  %s1 = inlined_call_operand.hbm [shape: f32[2,8,256], index: 1, kind: input, shape index: {}]
  %s2 = inlined_call_operand.hbm [shape: f32[8,256], index: 2, kind: input, shape index: {}]
  %s3 = inlined_call_operand.vmem [shape: f32[8,72], index: 3, kind: input, shape index: {}]
  %s4 = inlined_call_operand.vmem [shape: f32[8,1], index: 4, kind: input, shape index: {}]
  %s5 = inlined_call_operand.hbm [shape: f32[8,72], index: 5, kind: input, shape index: {}]
  %s6 = inlined_call_operand.vmem [shape: f32[8,1], index: 6, kind: input, shape index: {}]
  %s7 = inlined_call_operand.vmem [shape: f32[8,8], index: 7, kind: input, shape index: {}]
  %s8 = inlined_call_operand.vmem [shape: f32[8,1], index: 8, kind: input, shape index: {}]
  %s9 = inlined_call_operand.hbm [shape: f32[8,8], index: 9, kind: input, shape index: {}]
  %s10 = inlined_call_operand.vmem [shape: f32[8,1], index: 10, kind: input, shape index: {}]
  %s11 = inlined_call_operand.hbm [shape: f32[2,8,256], index: 11, kind: output, shape index: {0}]
  %s12 = inlined_call_operand.hbm [shape: f32[2,8,256], index: 12, kind: output, shape index: {1}]
  %13 = xla_tuple %s11, %s12
  %s14 = sld [smem:[#allocation0]]
  $region101: #{tpu_custom_call.1} parent=0
    _
  %s16 = ssub.s32 1, %s14
  %s17 = scalar_select 0, %s16, %s14
  $region1: #{tpu_custom_call.1} parent=0
    #allocation3 [shape = 'u8[16384]{0}', space=vmem, size = 0x4000, scoped, tag = 'input window, operand 1']
    #allocation4 [shape = 's32[2]{0}', space=sflag, size = 0x8, scoped, tag = 'scoped memory for tpu_custom_call.1']
    #allocation5 [shape = 's32[2]{0}', space=sflag, size = 0x8, scoped, tag = 'scoped memory for tpu_custom_call.1']
    #allocation6 [shape = 'u8[8192]{0}', space=vmem, size = 0x2000, scoped, tag = 'input window, operand 2, single buffered']
    #allocation7 [shape = 's32[1]{0}', space=sflag, size = 0x4, scoped, tag = 'scoped memory for tpu_custom_call.1']
    #allocation8 [shape = 'u8[4096]{0}', space=vmem, size = 0x1000, scoped, tag = 'input window, operand 5, single buffered']
    #allocation9 [shape = 'u8[4096]{0}', space=vmem, size = 0x1000, scoped, tag = 'input window, operand 9, single buffered']
    #allocation10 [shape = 's32[1]{0}', space=sflag, size = 0x4, scoped, tag = 'scoped memory for tpu_custom_call.1']
    #allocation11 [shape = 'u8[16384]{0}', space=vmem, size = 0x4000, scoped, tag = 'output window, operand 0']
    #allocation12 [shape = 'u8[16384]{0}', space=vmem, size = 0x4000, scoped, tag = 'output window, operand 1']
    #allocation13 [shape = 's32[2]{0}', space=sflag, size = 0x8, scoped, tag = 'scoped memory for tpu_custom_call.1']
    %18 = vsyncpa [#allocation4], 0
    %s19 = scalar_lea.sflag [#allocation4], 1
    %20 = vsyncpa %s19, 0
    %21 = vsyncpa [#allocation7], 0
    %22 = vsyncpa [#allocation10], 0
    %23 = vsyncpa [#allocation5], 0
    %s24 = scalar_lea.sflag [#allocation5], 1
    %25 = vsyncpa %s24, 0
    %26 = vsyncpa [#allocation13], 0
    %s27 = scalar_lea.sflag [#allocation13], 1
    %28 = vsyncpa %s27, 0
    loop: start=0, step=1, limit=4
    $region2: #{tpu_custom_call.1} parent=1 // loop_pre_header
      _
    $region3: #{tpu_custom_call.1} parent=1 // loop_header
      %s30 = sphi 0, %s34
      %p31 = scmp.ge.s32.totalorder %s30, 4
      %s40 = sphi 0, %s42
      %s43 = sphi 0, %s40
      %s44 = sphi 0, %s43
      %s60 = sphi 0, %s44
      %s66 = sphi 0, %s68
      %s69 = sphi 0, %s66
      %s70 = sphi 0, %s69
      %s86 = sphi 0, %s70
      %s90 = sphi 0, %s90
      %s92 = sphi 0, %s90
      %s93 = sphi 0, %s92
      %s107 = sphi 0, %s93
      %s111 = sphi 0, %s111
      %s113 = sphi 0, %s111
      %s114 = sphi 0, %s113
      %s128 = sphi 0, %s114
      %s132 = sphi 0, %s132
      %s134 = sphi 0, %s132
      %s135 = sphi 0, %s134
      %s149 = sphi 0, %s135
      %s153 = sphi 0, %s153
      %s155 = sphi 0, %s153
      %s156 = sphi 0, %s155
      %s170 = sphi 0, %s156
      %s174 = sphi 0, %s174
      %s176 = sphi 0, %s174
      %s177 = sphi 0, %s176
      %s191 = sphi 0, %s177
      %s195 = sphi 0, %s195
      %s197 = sphi 0, %s195
      %s198 = sphi 0, %s197
      %s212 = sphi 0, %s198
      %s216 = sphi 0, %s216
      %s218 = sphi 0, %s216
      %s219 = sphi 0, %s218
      %s233 = sphi 0, %s219
      %s237 = sphi 0, %s237
      %s239 = sphi 0, %s237
      %s240 = sphi 0, %s239
      %s254 = sphi 0, %s240
      %s258 = sphi 0, %s258
      %s260 = sphi 0, %s258
      %s261 = sphi 0, %s260
      %s275 = sphi 0, %s261
      %s281 = sphi 0, %s283
      %s284 = sphi 0, %s281
      %s285 = sphi 0, %s284
      %s301 = sphi 0, %s285
      %s307 = sphi 0, %s309
      %s310 = sphi 0, %s307
      %s311 = sphi 0, %s310
      %s327 = sphi 0, %s311
    $region4: #{tpu_custom_call.1} parent=1 // loop_header_branch
      %33 = sbr.rel (%p31) target = $region8
    $region5: #{tpu_custom_call.1} parent=1 // loop_body
      %s35 = ssub.s32 %s30, 1
      %s36 = ssub.s32 %s30, 2
      %s37 = sadd.s32 %s30, 1
      %s38 = ssub.s32 %s30, %s37
      %p39 = scmp.eq.s32.totalorder %s38, 0
      %s41 = sadd.s32 %s40, 1
      %s42 = scalar_select %p39, %s40, %s41
      %p45 = pneg %p39
      %p46 = scmp.eq.s32.totalorder %s30, 1
      %p47 = por %p45, %p46
      %p48 = scmp.ne.s32.totalorder %s40, %s43
      %p49 = scmp.eq.s32.totalorder %s30, 0
      %p50 = por %p48, %p49
      %p51 = scmp.ne.s32.totalorder %s40, %s43
      %p52 = scmp.eq.s32.totalorder %s35, 1
      %p53 = por %p51, %p52
      %p54 = scmp.ne.s32.totalorder %s43, %s44
      %p55 = scmp.eq.s32.totalorder %s35, 0
      %p56 = por %p54, %p55
      %p57 = scmp.ne.s32.totalorder %s43, %s44
      %p58 = scmp.eq.s32.totalorder %s36, 1
      %p59 = por %p57, %p58
      %p61 = scmp.ne.s32.totalorder %s44, %s60
      %p62 = scmp.eq.s32.totalorder %s36, 0
      %p63 = por %p61, %p62
      %s64 = ssub.s32 %s30, %s37
      %p65 = scmp.eq.s32.totalorder %s64, 0
      %s67 = sadd.s32 %s66, 1
      %s68 = scalar_select %p65, %s66, %s67
      %p71 = pneg %p65
      %p72 = scmp.eq.s32.totalorder %s30, 1
      %p73 = por %p71, %p72
      %p74 = scmp.ne.s32.totalorder %s66, %s69
      %p75 = scmp.eq.s32.totalorder %s30, 0
      %p76 = por %p74, %p75
      %p77 = scmp.ne.s32.totalorder %s66, %s69
      %p78 = scmp.eq.s32.totalorder %s35, 1
      %p79 = por %p77, %p78
      %p80 = scmp.ne.s32.totalorder %s69, %s70
      %p81 = scmp.eq.s32.totalorder %s35, 0
      %p82 = por %p80, %p81
      %p83 = scmp.ne.s32.totalorder %s69, %s70
      %p84 = scmp.eq.s32.totalorder %s36, 1
      %p85 = por %p83, %p84
      %p87 = scmp.ne.s32.totalorder %s70, %s86
      %p88 = scmp.eq.s32.totalorder %s36, 0
      %p89 = por %p87, %p88
      %s91 = sadd.s32 %s90, 1
      %p94 = scmp.eq.s32.totalorder %s30, 1
      %p95 = scmp.ne.s32.totalorder %s90, %s92
      %p96 = scmp.eq.s32.totalorder %s30, 0
      %p97 = por %p95, %p96
      %p98 = scmp.ne.s32.totalorder %s90, %s92
      %p99 = scmp.eq.s32.totalorder %s35, 1
      %p100 = por %p98, %p99
      %p101 = scmp.ne.s32.totalorder %s92, %s93
      %p102 = scmp.eq.s32.totalorder %s35, 0
      %p103 = por %p101, %p102
      %p104 = scmp.ne.s32.totalorder %s92, %s93
      %p105 = scmp.eq.s32.totalorder %s36, 1
      %p106 = por %p104, %p105
      %p108 = scmp.ne.s32.totalorder %s93, %s107
      %p109 = scmp.eq.s32.totalorder %s36, 0
      %p110 = por %p108, %p109
      %s112 = sadd.s32 %s111, 1
      %p115 = scmp.eq.s32.totalorder %s30, 1
      %p116 = scmp.ne.s32.totalorder %s111, %s113
      %p117 = scmp.eq.s32.totalorder %s30, 0
      %p118 = por %p116, %p117
      %p119 = scmp.ne.s32.totalorder %s111, %s113
      %p120 = scmp.eq.s32.totalorder %s35, 1
      %p121 = por %p119, %p120
      %p122 = scmp.ne.s32.totalorder %s113, %s114
      %p123 = scmp.eq.s32.totalorder %s35, 0
      %p124 = por %p122, %p123
      %p125 = scmp.ne.s32.totalorder %s113, %s114
      %p126 = scmp.eq.s32.totalorder %s36, 1
      %p127 = por %p125, %p126
      %p129 = scmp.ne.s32.totalorder %s114, %s128
      %p130 = scmp.eq.s32.totalorder %s36, 0
      %p131 = por %p129, %p130
      %s133 = sadd.s32 %s132, 1
      %p136 = scmp.eq.s32.totalorder %s30, 1
      %p137 = scmp.ne.s32.totalorder %s132, %s134
      %p138 = scmp.eq.s32.totalorder %s30, 0
      %p139 = por %p137, %p138
      %p140 = scmp.ne.s32.totalorder %s132, %s134
      %p141 = scmp.eq.s32.totalorder %s35, 1
      %p142 = por %p140, %p141
      %p143 = scmp.ne.s32.totalorder %s134, %s135
      %p144 = scmp.eq.s32.totalorder %s35, 0
      %p145 = por %p143, %p144
      %p146 = scmp.ne.s32.totalorder %s134, %s135
      %p147 = scmp.eq.s32.totalorder %s36, 1
      %p148 = por %p146, %p147
      %p150 = scmp.ne.s32.totalorder %s135, %s149
      %p151 = scmp.eq.s32.totalorder %s36, 0
      %p152 = por %p150, %p151
      %s154 = sadd.s32 %s153, 1
      %p157 = scmp.eq.s32.totalorder %s30, 1
      %p158 = scmp.ne.s32.totalorder %s153, %s155
      %p159 = scmp.eq.s32.totalorder %s30, 0
      %p160 = por %p158, %p159
      %p161 = scmp.ne.s32.totalorder %s153, %s155
      %p162 = scmp.eq.s32.totalorder %s35, 1
      %p163 = por %p161, %p162
      %p164 = scmp.ne.s32.totalorder %s155, %s156
      %p165 = scmp.eq.s32.totalorder %s35, 0
      %p166 = por %p164, %p165
      %p167 = scmp.ne.s32.totalorder %s155, %s156
      %p168 = scmp.eq.s32.totalorder %s36, 1
      %p169 = por %p167, %p168
      %p171 = scmp.ne.s32.totalorder %s156, %s170
      %p172 = scmp.eq.s32.totalorder %s36, 0
      %p173 = por %p171, %p172
      %s175 = sadd.s32 %s174, 1
      %p178 = scmp.eq.s32.totalorder %s30, 1
      %p179 = scmp.ne.s32.totalorder %s174, %s176
      %p180 = scmp.eq.s32.totalorder %s30, 0
      %p181 = por %p179, %p180
      %p182 = scmp.ne.s32.totalorder %s174, %s176
      %p183 = scmp.eq.s32.totalorder %s35, 1
      %p184 = por %p182, %p183
      %p185 = scmp.ne.s32.totalorder %s176, %s177
      %p186 = scmp.eq.s32.totalorder %s35, 0
      %p187 = por %p185, %p186
      %p188 = scmp.ne.s32.totalorder %s176, %s177
      %p189 = scmp.eq.s32.totalorder %s36, 1
      %p190 = por %p188, %p189
      %p192 = scmp.ne.s32.totalorder %s177, %s191
      %p193 = scmp.eq.s32.totalorder %s36, 0
      %p194 = por %p192, %p193
      %s196 = sadd.s32 %s195, 1
      %p199 = scmp.eq.s32.totalorder %s30, 1
      %p200 = scmp.ne.s32.totalorder %s195, %s197
      %p201 = scmp.eq.s32.totalorder %s30, 0
      %p202 = por %p200, %p201
      %p203 = scmp.ne.s32.totalorder %s195, %s197
      %p204 = scmp.eq.s32.totalorder %s35, 1
      %p205 = por %p203, %p204
      %p206 = scmp.ne.s32.totalorder %s197, %s198
      %p207 = scmp.eq.s32.totalorder %s35, 0
      %p208 = por %p206, %p207
      %p209 = scmp.ne.s32.totalorder %s197, %s198
      %p210 = scmp.eq.s32.totalorder %s36, 1
      %p211 = por %p209, %p210
      %p213 = scmp.ne.s32.totalorder %s198, %s212
      %p214 = scmp.eq.s32.totalorder %s36, 0
      %p215 = por %p213, %p214
      %s217 = sadd.s32 %s216, 1
      %p220 = scmp.eq.s32.totalorder %s30, 1
      %p221 = scmp.ne.s32.totalorder %s216, %s218
      %p222 = scmp.eq.s32.totalorder %s30, 0
      %p223 = por %p221, %p222
      %p224 = scmp.ne.s32.totalorder %s216, %s218
      %p225 = scmp.eq.s32.totalorder %s35, 1
      %p226 = por %p224, %p225
      %p227 = scmp.ne.s32.totalorder %s218, %s219
      %p228 = scmp.eq.s32.totalorder %s35, 0
      %p229 = por %p227, %p228
      %p230 = scmp.ne.s32.totalorder %s218, %s219
      %p231 = scmp.eq.s32.totalorder %s36, 1
      %p232 = por %p230, %p231
      %p234 = scmp.ne.s32.totalorder %s219, %s233
      %p235 = scmp.eq.s32.totalorder %s36, 0
      %p236 = por %p234, %p235
      %s238 = sadd.s32 %s237, 1
      %p241 = scmp.eq.s32.totalorder %s30, 1
      %p242 = scmp.ne.s32.totalorder %s237, %s239
      %p243 = scmp.eq.s32.totalorder %s30, 0
      %p244 = por %p242, %p243
      %p245 = scmp.ne.s32.totalorder %s237, %s239
      %p246 = scmp.eq.s32.totalorder %s35, 1
      %p247 = por %p245, %p246
      %p248 = scmp.ne.s32.totalorder %s239, %s240
      %p249 = scmp.eq.s32.totalorder %s35, 0
      %p250 = por %p248, %p249
      %p251 = scmp.ne.s32.totalorder %s239, %s240
      %p252 = scmp.eq.s32.totalorder %s36, 1
      %p253 = por %p251, %p252
      %p255 = scmp.ne.s32.totalorder %s240, %s254
      %p256 = scmp.eq.s32.totalorder %s36, 0
      %p257 = por %p255, %p256
      %s259 = sadd.s32 %s258, 1
      %p262 = scmp.eq.s32.totalorder %s30, 1
      %p263 = scmp.ne.s32.totalorder %s258, %s260
      %p264 = scmp.eq.s32.totalorder %s30, 0
      %p265 = por %p263, %p264
      %p266 = scmp.ne.s32.totalorder %s258, %s260
      %p267 = scmp.eq.s32.totalorder %s35, 1
      %p268 = por %p266, %p267
      %p269 = scmp.ne.s32.totalorder %s260, %s261
      %p270 = scmp.eq.s32.totalorder %s35, 0
      %p271 = por %p269, %p270
      %p272 = scmp.ne.s32.totalorder %s260, %s261
      %p273 = scmp.eq.s32.totalorder %s36, 1
      %p274 = por %p272, %p273
      %p276 = scmp.ne.s32.totalorder %s261, %s275
      %p277 = scmp.eq.s32.totalorder %s36, 0
      %p278 = por %p276, %p277
      %s279 = ssub.s32 %s30, %s37
      %p280 = scmp.eq.s32.totalorder %s279, 0
      %s282 = sadd.s32 %s281, 1
      %s283 = scalar_select %p280, %s281, %s282
      %p286 = pneg %p280
      %p287 = scmp.eq.s32.totalorder %s30, 1
      %p288 = por %p286, %p287
      %p289 = scmp.ne.s32.totalorder %s281, %s284
      %p290 = scmp.eq.s32.totalorder %s30, 0
      %p291 = por %p289, %p290
      %p292 = scmp.ne.s32.totalorder %s281, %s284
      %p293 = scmp.eq.s32.totalorder %s35, 1
      %p294 = por %p292, %p293
      %p295 = scmp.ne.s32.totalorder %s284, %s285
      %p296 = scmp.eq.s32.totalorder %s35, 0
      %p297 = por %p295, %p296
      %p298 = scmp.ne.s32.totalorder %s284, %s285
      %p299 = scmp.eq.s32.totalorder %s36, 1
      %p300 = por %p298, %p299
      %p302 = scmp.ne.s32.totalorder %s285, %s301
      %p303 = scmp.eq.s32.totalorder %s36, 0
      %p304 = por %p302, %p303
      %s305 = ssub.s32 %s30, %s37
      %p306 = scmp.eq.s32.totalorder %s305, 0
      %s308 = sadd.s32 %s307, 1
      %s309 = scalar_select %p306, %s307, %s308
      %p312 = pneg %p306
      %p313 = scmp.eq.s32.totalorder %s30, 1
      %p314 = por %p312, %p313
      %p315 = scmp.ne.s32.totalorder %s307, %s310
      %p316 = scmp.eq.s32.totalorder %s30, 0
      %p317 = por %p315, %p316
      %p318 = scmp.ne.s32.totalorder %s307, %s310
      %p319 = scmp.eq.s32.totalorder %s35, 1
      %p320 = por %p318, %p319
      %p321 = scmp.ne.s32.totalorder %s310, %s311
      %p322 = scmp.eq.s32.totalorder %s35, 0
      %p323 = por %p321, %p322
      %p324 = scmp.ne.s32.totalorder %s310, %s311
      %p325 = scmp.eq.s32.totalorder %s36, 1
      %p326 = por %p324, %p325
      %p328 = scmp.ne.s32.totalorder %s311, %s327
      %p329 = scmp.eq.s32.totalorder %s36, 0
      %p330 = por %p328, %p329
      %p331 = scmp.le.s32.totalorder 1, %s30
      %p332 = scmp.lt.s32.totalorder %s30, 3
      %p333 = pnand %p331, %p332
      %p334 = pneg %p333
      // Predicated region
      $region9: #{tpu_custom_call.1} parent=5 // pred_check
        _
      $region10: #{tpu_custom_call.1} parent=5 // pred_check_branch
        %336 = sbr.rel (%p333) target = $region12
      $region11: #{tpu_custom_call.1} parent=5 // pred_region
        %s337 = ssub.s32 %s30, 1
        // Predicated region
        $region13: #{tpu_custom_call.1} parent=11 // pred_check
          %p338 = pneg %p103
        $region14: #{tpu_custom_call.1} parent=11 // pred_check_branch
          %340 = sbr.rel (%p338) target = $region16
        $region15: #{tpu_custom_call.1} parent=11 // pred_region
          %s342 = ssub.s32 256, 256
          %343 = vsyncadd [#allocation7], %s342
          %s345 = sshll.u32 [#allocation6], 4
          %s346 = int_to_ptr.vmem [resolvable:$true] %s345
          %348 = dma.hbm_to_vmem [thread:$0]  %s2, 256, %s346, [#allocation7]
        $region16: #{tpu_custom_call.1} parent=11 // pred_fallthru
          _
        // Predicated region
        $region17: #{tpu_custom_call.1} parent=11 // pred_check
          %p349 = pneg %p124
        $region18: #{tpu_custom_call.1} parent=11 // pred_check_branch
          %351 = sbr.rel (%p349) target = $region20
        $region19: #{tpu_custom_call.1} parent=11 // pred_region
          _
        $region20: #{tpu_custom_call.1} parent=11 // pred_fallthru
          _
        // Predicated region
        $region21: #{tpu_custom_call.1} parent=11 // pred_check
          %p352 = pneg %p145
        $region22: #{tpu_custom_call.1} parent=11 // pred_check_branch
          %354 = sbr.rel (%p352) target = $region24
        $region23: #{tpu_custom_call.1} parent=11 // pred_region
          _
        $region24: #{tpu_custom_call.1} parent=11 // pred_fallthru
          _
        // Predicated region
        $region25: #{tpu_custom_call.1} parent=11 // pred_check
          %p355 = pneg %p166
        $region26: #{tpu_custom_call.1} parent=11 // pred_check_branch
          %357 = sbr.rel (%p355) target = $region28
        $region27: #{tpu_custom_call.1} parent=11 // pred_region
          %s359 = ssub.s32 128, 128
          %360 = vsyncadd [#allocation7], %s359
          %s362 = sshll.u32 [#allocation8], 4
          %s363 = int_to_ptr.vmem [resolvable:$true] %s362
          %365 = dma.hbm_to_vmem [thread:$0]  %s5, 128, %s363, [#allocation7]
        $region28: #{tpu_custom_call.1} parent=11 // pred_fallthru
          _
        // Predicated region
        $region29: #{tpu_custom_call.1} parent=11 // pred_check
          %p366 = pneg %p187
        $region30: #{tpu_custom_call.1} parent=11 // pred_check_branch
          %368 = sbr.rel (%p366) target = $region32
        $region31: #{tpu_custom_call.1} parent=11 // pred_region
          _
        $region32: #{tpu_custom_call.1} parent=11 // pred_fallthru
          _
        // Predicated region
        $region33: #{tpu_custom_call.1} parent=11 // pred_check
          %p369 = pneg %p208
        $region34: #{tpu_custom_call.1} parent=11 // pred_check_branch
          %371 = sbr.rel (%p369) target = $region36
        $region35: #{tpu_custom_call.1} parent=11 // pred_region
          _
        $region36: #{tpu_custom_call.1} parent=11 // pred_fallthru
          _
        // Predicated region
        $region37: #{tpu_custom_call.1} parent=11 // pred_check
          %p372 = pneg %p229
        $region38: #{tpu_custom_call.1} parent=11 // pred_check_branch
          %374 = sbr.rel (%p372) target = $region40
        $region39: #{tpu_custom_call.1} parent=11 // pred_region
          _
        $region40: #{tpu_custom_call.1} parent=11 // pred_fallthru
          _
        // Predicated region
        $region41: #{tpu_custom_call.1} parent=11 // pred_check
          %p375 = pneg %p250
        $region42: #{tpu_custom_call.1} parent=11 // pred_check_branch
          %377 = sbr.rel (%p375) target = $region44
        $region43: #{tpu_custom_call.1} parent=11 // pred_region
          %s379 = ssub.s32 128, 128
          %380 = vsyncadd [#allocation10], %s379
          %s382 = sshll.u32 [#allocation9], 4
          %s383 = int_to_ptr.vmem [resolvable:$true] %s382
          %385 = dma.hbm_to_vmem [thread:$0]  %s9, 128, %s383, [#allocation10]
        $region44: #{tpu_custom_call.1} parent=11 // pred_fallthru
          _
        // Predicated region
        $region45: #{tpu_custom_call.1} parent=11 // pred_check
          %p386 = pneg %p271
        $region46: #{tpu_custom_call.1} parent=11 // pred_check_branch
          %388 = sbr.rel (%p386) target = $region48
        $region47: #{tpu_custom_call.1} parent=11 // pred_region
          _
        $region48: #{tpu_custom_call.1} parent=11 // pred_fallthru
          _
      $region12: #{tpu_custom_call.1} parent=5 // pred_fallthru
        _
      %p389 = scmp.lt.s32.totalorder %s30, 2
      // Predicated region
      $region49: #{tpu_custom_call.1} parent=5 // pred_check
        %p390 = pneg %p389
      $region50: #{tpu_custom_call.1} parent=5 // pred_check_branch
        %392 = sbr.rel (%p390) target = $region52
      $region51: #{tpu_custom_call.1} parent=5 // pred_region
        // Predicated region
        $region53: #{tpu_custom_call.1} parent=51 // pred_check
          %p393 = pneg %p50
        $region54: #{tpu_custom_call.1} parent=51 // pred_check_branch
          %395 = sbr.rel (%p393) target = $region56
        $region55: #{tpu_custom_call.1} parent=51 // pred_region
          %p396 = scmp.lt.s32.totalorder %s30, 1
          %s397 = scalar_select %p396, %s30, 1
          %s398 = smul.addr %s397, 2
          %s399 = smul.addr %s398, 8
          %s400 = scalar_lea.vmem %s0, %s399
        $region56: #{tpu_custom_call.1} parent=51 // pred_fallthru
          _
        // Predicated region
        $region57: #{tpu_custom_call.1} parent=51 // pred_check
          %p401 = pneg %p76
        $region58: #{tpu_custom_call.1} parent=51 // pred_check_branch
          %403 = sbr.rel (%p401) target = $region60
        $region59: #{tpu_custom_call.1} parent=51 // pred_region
          %s404 = sand.u32 %s66, 1
          %s405 = scalar_lea.sflag [#allocation4], %s404
          %s406 = sand.u32 %s66, 1
          %s407 = smul.addr %s406, 16
          %s408 = scalar_lea.vmem [#allocation3], %s407
          %s410 = ssub.s32 256, 256
          %411 = vsyncadd %s405, %s410
          %s412 = smul.addr %s30, 2
          %s413 = smul.addr %s412, 128
          %s414 = scalar_lea.hbm %s1, %s413
          %s416 = sshll.u32 %s408, 4
          %s417 = int_to_ptr.vmem [resolvable:$true] %s416
          %419 = dma.hbm_to_vmem [thread:$0]  %s414, 256, %s417, %s405
        $region60: #{tpu_custom_call.1} parent=51 // pred_fallthru
          _
      $region52: #{tpu_custom_call.1} parent=5 // pred_fallthru
        _
      %p420 = scmp.le.s32.totalorder 1, %s30
      %p421 = scmp.lt.s32.totalorder %s30, 3
      %p422 = pnand %p420, %p421
      %p423 = pneg %p422
      // Predicated region
      $region61: #{tpu_custom_call.1} parent=5 // pred_check
        _
      $region62: #{tpu_custom_call.1} parent=5 // pred_check_branch
        %425 = sbr.rel (%p422) target = $region64
      $region63: #{tpu_custom_call.1} parent=5 // pred_region
        %s426 = ssub.s32 %s30, 1
        %s427 = sand.u32 %s69, 1
        %s428 = scalar_lea.sflag [#allocation4], %s427
        %s429 = sand.u32 %s69, 1
        %s430 = smul.addr %s429, 16
        %s431 = scalar_lea.vmem [#allocation3], %s430
        // Predicated region
        $region65: #{tpu_custom_call.1} parent=63 // pred_check
          %p432 = pneg %p82
        $region66: #{tpu_custom_call.1} parent=63 // pred_check_branch
          %434 = sbr.rel (%p432) target = $region68
        $region67: #{tpu_custom_call.1} parent=63 // pred_region
          %435 = dma.done %s428, 256
        $region68: #{tpu_custom_call.1} parent=63 // pred_fallthru
          _
        // Predicated region
        $region69: #{tpu_custom_call.1} parent=63 // pred_check
          %p436 = pneg %p103
        $region70: #{tpu_custom_call.1} parent=63 // pred_check_branch
          %438 = sbr.rel (%p436) target = $region72
        $region71: #{tpu_custom_call.1} parent=63 // pred_region
          %439 = dma.done [#allocation7], 256
        $region72: #{tpu_custom_call.1} parent=63 // pred_fallthru
          _
        // Predicated region
        $region73: #{tpu_custom_call.1} parent=63 // pred_check
          %p440 = pneg %p166
        $region74: #{tpu_custom_call.1} parent=63 // pred_check_branch
          %442 = sbr.rel (%p440) target = $region76
        $region75: #{tpu_custom_call.1} parent=63 // pred_region
          %443 = dma.done [#allocation7], 128
        $region76: #{tpu_custom_call.1} parent=63 // pred_fallthru
          _
        // Predicated region
        $region77: #{tpu_custom_call.1} parent=63 // pred_check
          %p444 = pneg %p250
        $region78: #{tpu_custom_call.1} parent=63 // pred_check_branch
          %446 = sbr.rel (%p444) target = $region80
        $region79: #{tpu_custom_call.1} parent=63 // pred_region
          %447 = dma.done [#allocation10], 128
        $region80: #{tpu_custom_call.1} parent=63 // pred_fallthru
          _
        %p448 = scmp.lt.s32.totalorder %s35, 1
        %s449 = scalar_select %p448, %s35, 1
        %s450 = smul.addr %s449, 2
        %s451 = smul.addr %s450, 8
        %s452 = scalar_lea.vmem %s0, %s451
        %p453 = pneg %p56
        %p454 = pneg %p53
        %s455 = sand.u32 %s69, 1
        %s456 = scalar_lea.sflag [#allocation4], %s455
        %s457 = sand.u32 %s69, 1
        %s458 = smul.addr %s457, 16
        %s459 = scalar_lea.vmem [#allocation3], %s458
        %p460 = pneg %p82
        %p461 = pneg %p79
        %p462 = pneg %p103
        %p463 = pneg %p100
        %p464 = pneg %p124
        %p465 = pneg %p121
        %p466 = pneg %p145
        %p467 = pneg %p142
        %p468 = pneg %p166
        %p469 = pneg %p163
        %p470 = pneg %p187
        %p471 = pneg %p184
        %p472 = pneg %p208
        %p473 = pneg %p205
        %p474 = pneg %p229
        %p475 = pneg %p226
        %p476 = pneg %p250
        %p477 = pneg %p247
        %p478 = pneg %p271
        %p479 = pneg %p268
        %p480 = pneg %p297
        %p481 = pneg %p294
        %s482 = sand.u32 %s284, 1
        %s483 = scalar_lea.sflag [#allocation5], %s482
        %s484 = sand.u32 %s284, 1
        %s485 = smul.addr %s484, 16
        %s486 = scalar_lea.vmem [#allocation11], %s485
        %p487 = pneg %p323
        %p488 = pneg %p320
        %s489 = sand.u32 %s310, 1
        %s490 = scalar_lea.sflag [#allocation13], %s489
        %s491 = sand.u32 %s310, 1
        %s492 = smul.addr %s491, 16
        %s493 = scalar_lea.vmem [#allocation12], %s492
        %p494 = scmp.lt.s32.totalorder %s35, 1
        %s495 = scalar_select %p494, %s35, 1
        %s496 = smul.addr %s495, 2
        %s497 = smul.addr %s496, 8
        %s498 = scalar_lea.vmem %s0, %s497
        %v499 = vld [vmem:[%s498] sm:$0xff]
        %v500 = vld [vmem:[%s498 + $0x8] sm:$0xff]
        %v501 = vld [vmem:[%s431] sm:$0xff]
        %v502 = vld [vmem:[%s431 + $0x8] sm:$0xff]
        %v503 = vld [vmem:[#allocation6] sm:$0xff]
        %v504 = vld [vmem:[#allocation6 + $0x8] sm:$0xff]
        %505 = vrot.lane.b32.xlu0 %v499, 17
        %v506 = vpop.permute.xlu0 %505
        %507 = vrot.lane.b32.xlu0 %v500, 17
        %v508 = vpop.permute.xlu0 %507
        %v509 = vlaneseq
        %v510 = vand.u32 %v509, 127
        %vm511 = vcmp.lt.s32.totalorder %v510, 17
        %v512 = vsel %vm511, %v506, %v508
        %v513 = vsel %vm511, %v508, %v506
        %v514 = vlaneseq
        %v515 = vshrl.u32 %v514, 7
        %v516 = vsub.s32 0, %v515
        %v517 = vrot.slane %v503, %v516
        %v518 = vlaneseq
        %v519 = vshrl.u32 %v518, 7
        %v520 = vsub.s32 0, %v519
        %v521 = vrot.slane %v504, %v520
        %v522 = vmul.f32 %v513, %v517
        %v523 = vmul.f32 %v512, %v521
        %524 = vst [vmem:[#allocation2] sm:$0xff] %v522
        %525 = vst [vmem:[#allocation2 + $0x8] sm:$0xff] %v523
        %526 = vrot.lane.b32.xlu0 %v499, 16
        %v527 = vpop.permute.xlu0 %526
        %528 = vrot.lane.b32.xlu0 %v500, 16
        %v529 = vpop.permute.xlu0 %528
        %vm530 = vcmp.lt.s32.totalorder %v510, 16
        %v531 = vsel %vm530, %v527, %v529
        %v532 = vsel %vm530, %v529, %v527
        %v533 = vlaneseq
        %v534 = vshrl.u32 %v533, 7
        %v535 = vsub.s32 1, %v534
        %v536 = vrot.slane %v503, %v535
        %v537 = vlaneseq
        %v538 = vshrl.u32 %v537, 7
        %v539 = vsub.s32 1, %v538
        %v540 = vrot.slane %v504, %v539
        %v541 = vmul.f32 %v532, %v536
        %v542 = vmul.f32 %v531, %v540
        %543 = vst [vmem:[#allocation2 + $0x10] sm:$0xff] %v541
        %544 = vst [vmem:[#allocation2 + $0x18] sm:$0xff] %v542
        %545 = vrot.lane.b32.xlu0 %v499, 15
        %v546 = vpop.permute.xlu0 %545
        %547 = vrot.lane.b32.xlu0 %v500, 15
        %v548 = vpop.permute.xlu0 %547
        %vm549 = vcmp.lt.s32.totalorder %v510, 15
        %v550 = vsel %vm549, %v546, %v548
        %v551 = vsel %vm549, %v548, %v546
        %v552 = vlaneseq
        %v553 = vshrl.u32 %v552, 7
        %v554 = vsub.s32 2, %v553
        %v555 = vrot.slane %v503, %v554
        %v556 = vlaneseq
        %v557 = vshrl.u32 %v556, 7
        %v558 = vsub.s32 2, %v557
        %v559 = vrot.slane %v504, %v558
        %v560 = vmul.f32 %v551, %v555
        %v561 = vmul.f32 %v550, %v559
        %562 = vst [vmem:[#allocation2 + $0x20] sm:$0xff] %v560
        %563 = vst [vmem:[#allocation2 + $0x28] sm:$0xff] %v561
        %564 = vrot.lane.b32.xlu0 %v499, 1
        %v565 = vpop.permute.xlu0 %564
        %566 = vrot.lane.b32.xlu0 %v500, 1
        %v567 = vpop.permute.xlu0 %566
        %vm568 = vcmp.lt.s32.totalorder %v510, 1
        %v569 = vsel %vm568, %v565, %v567
        %v570 = vsel %vm568, %v567, %v565
        %v571 = vlaneseq
        %v572 = vshrl.u32 %v571, 7
        %v573 = vsub.s32 3, %v572
        %v574 = vrot.slane %v503, %v573
        %v575 = vlaneseq
        %v576 = vshrl.u32 %v575, 7
        %v577 = vsub.s32 3, %v576
        %v578 = vrot.slane %v504, %v577
        %v579 = vmul.f32 %v570, %v574
        %v580 = vmul.f32 %v569, %v578
        %581 = vst [vmem:[#allocation2 + $0x30] sm:$0xff] %v579
        %582 = vst [vmem:[#allocation2 + $0x38] sm:$0xff] %v580
        %583 = vst [vmem:[#allocation2 + $0x40] sm:$0xff] %v499
        %584 = vst [vmem:[#allocation2 + $0x48] sm:$0xff] %v500
        %585 = vrot.lane.b32.xlu0 %v499, 127
        %v586 = vpop.permute.xlu0 %585
        %587 = vrot.lane.b32.xlu0 %v500, 127
        %v588 = vpop.permute.xlu0 %587
        %vm589 = vcmp.lt.s32.totalorder %v510, 127
        %v590 = vsel %vm589, %v586, %v588
        %v591 = vsel %vm589, %v588, %v586
        %v592 = vlaneseq
        %v593 = vshrl.u32 %v592, 7
        %v594 = vsub.s32 4, %v593
        %v595 = vrot.slane %v503, %v594
        %v596 = vlaneseq
        %v597 = vshrl.u32 %v596, 7
        %v598 = vsub.s32 4, %v597
        %v599 = vrot.slane %v504, %v598
        %v600 = vmul.f32 %v590, %v595
        %v601 = vmul.f32 %v591, %v599
        %602 = vst [vmem:[#allocation2 + $0x50] sm:$0xff] %v600
        %603 = vst [vmem:[#allocation2 + $0x58] sm:$0xff] %v601
        %604 = vrot.lane.b32.xlu0 %v499, 113
        %v605 = vpop.permute.xlu0 %604
        %606 = vrot.lane.b32.xlu0 %v500, 113
        %v607 = vpop.permute.xlu0 %606
        %vm608 = vcmp.lt.s32.totalorder %v510, 113
        %v609 = vsel %vm608, %v605, %v607
        %v610 = vsel %vm608, %v607, %v605
        %v611 = vlaneseq
        %v612 = vshrl.u32 %v611, 7
        %v613 = vsub.s32 5, %v612
        %v614 = vrot.slane %v503, %v613
        %v615 = vlaneseq
        %v616 = vshrl.u32 %v615, 7
        %v617 = vsub.s32 5, %v616
        %v618 = vrot.slane %v504, %v617
        %v619 = vmul.f32 %v609, %v614
        %v620 = vmul.f32 %v610, %v618
        %621 = vst [vmem:[#allocation2 + $0x60] sm:$0xff] %v619
        %622 = vst [vmem:[#allocation2 + $0x68] sm:$0xff] %v620
        %623 = vrot.lane.b32.xlu0 %v499, 112
        %v624 = vpop.permute.xlu0 %623
        %625 = vrot.lane.b32.xlu0 %v500, 112
        %v626 = vpop.permute.xlu0 %625
        %vm627 = vcmp.lt.s32.totalorder %v510, 112
        %v628 = vsel %vm627, %v624, %v626
        %v629 = vsel %vm627, %v626, %v624
        %v630 = vlaneseq
        %v631 = vshrl.u32 %v630, 7
        %v632 = vsub.s32 6, %v631
        %v633 = vrot.slane %v503, %v632
        %v634 = vlaneseq
        %v635 = vshrl.u32 %v634, 7
        %v636 = vsub.s32 6, %v635
        %v637 = vrot.slane %v504, %v636
        %v638 = vmul.f32 %v628, %v633
        %v639 = vmul.f32 %v629, %v637
        %640 = vst [vmem:[#allocation2 + $0x70] sm:$0xff] %v638
        %641 = vst [vmem:[#allocation2 + $0x78] sm:$0xff] %v639
        %642 = vrot.lane.b32.xlu0 %v499, 111
        %v643 = vpop.permute.xlu0 %642
        %644 = vrot.lane.b32.xlu0 %v500, 111
        %v645 = vpop.permute.xlu0 %644
        %vm646 = vcmp.lt.s32.totalorder %v510, 111
        %v647 = vsel %vm646, %v643, %v645
        %v648 = vsel %vm646, %v645, %v643
        %v649 = vlaneseq
        %v650 = vshrl.u32 %v649, 7
        %v651 = vsub.s32 7, %v650
        %v652 = vrot.slane %v503, %v651
        %v653 = vlaneseq
        %v654 = vshrl.u32 %v653, 7
        %v655 = vsub.s32 7, %v654
        %v656 = vrot.slane %v504, %v655
        %v657 = vmul.f32 %v647, %v652
        %v658 = vmul.f32 %v648, %v656
        %659 = vst [vmem:[#allocation2 + $0x80] sm:$0xff] %v657
        %660 = vst [vmem:[#allocation2 + $0x88] sm:$0xff] %v658
        %v661 = vld [vmem:[#allocation2] sm:$0xff]
        %v662 = vld [vmem:[#allocation2 + $0x8] sm:$0xff]
        %v663 = vld [vmem:[#allocation2 + $0x10] sm:$0xff]
        %v664 = vld [vmem:[#allocation2 + $0x18] sm:$0xff]
        %v665 = vld [vmem:[#allocation2 + $0x20] sm:$0xff]
        %v666 = vld [vmem:[#allocation2 + $0x28] sm:$0xff]
        %v667 = vld [vmem:[#allocation2 + $0x30] sm:$0xff]
        %v668 = vld [vmem:[#allocation2 + $0x38] sm:$0xff]
        %v669 = vld [vmem:[#allocation2 + $0x40] sm:$0xff]
        %v670 = vld [vmem:[#allocation2 + $0x48] sm:$0xff]
        %v671 = vld [vmem:[#allocation2 + $0x50] sm:$0xff]
        %v672 = vld [vmem:[#allocation2 + $0x58] sm:$0xff]
        %v673 = vld [vmem:[#allocation2 + $0x60] sm:$0xff]
        %v674 = vld [vmem:[#allocation2 + $0x68] sm:$0xff]
        %v675 = vld [vmem:[#allocation2 + $0x70] sm:$0xff]
        %v676 = vld [vmem:[#allocation2 + $0x78] sm:$0xff]
        %v677 = vld [vmem:[#allocation2 + $0x80] sm:$0xff]
        %v678 = vld [vmem:[#allocation2 + $0x88] sm:$0xff]
        %v679 = vld [vmem:[%s3] sm:$0xff]
        %v680 = vld [vmem:[%s4] sm:$0xff]
        %682 = vset.pattern.permute.xlu0 0
        %683 = vperm.xlu0 %682, %v680
        %v684 = vpop.permute.xlu0 %683
        %vm686 = vcmask 588800
        %v688 = vsel %vm686, %v679, 0
        %690 = vmatprep.subr.mxu0 0.0
        %691 = vmatpush1.msra.mxu0 0.0
        %692 = vmatprep.subr.mxu0 0.0
        %693 = vmatpush1.msra.mxu0 0.0
        %694 = vmatprep.subr.mxu0 0.0
        %695 = vmatpush1.msra.mxu0 0.0
        %696 = vmatprep.subr.mxu0 0.0
        %697 = vmatpush1.msra.mxu0 0.0
        %698 = vmatprep.subr.mxu0 0.0
        %699 = vmatpush1.msra.mxu0 0.0
        %700 = vmatprep.subr.mxu0 0.0
        %701 = vmatpush1.msra.mxu0 0.0
        %702 = vmatprep.subr.mxu0 0.0
        %703 = vmatpush1.msra.mxu0 0.0
        %704 = vmatprep.subr.mxu0 %v678
        %705 = vmatpush1.msra.mxu0 %v677
        %706 = vmatprep.subr.mxu0 %v676
        %707 = vmatpush1.msra.mxu0 %v675
        %708 = vmatprep.subr.mxu0 %v674
        %709 = vmatpush1.msra.mxu0 %v673
        %710 = vmatprep.subr.mxu0 %v672
        %711 = vmatpush1.msra.mxu0 %v671
        %712 = vmatprep.subr.mxu0 %v670
        %713 = vmatpush1.msra.mxu0 %v669
        %714 = vmatprep.subr.mxu0 %v668
        %715 = vmatpush1.msra.mxu0 %v667
        %716 = vmatprep.subr.mxu0 %v666
        %717 = vmatpush1.msra.mxu0 %v665
        %718 = vmatprep.subr.mxu0 %v664
        %719 = vmatpush1.msra.mxu0 %v663
        %720 = vmatprep.subr.mxu0 %v662
        %721 = vmatpush1.msra.mxu0 %v661
        %722 = vmatprep.subr.mxu0 0.0
        %723 = vmatpush2.msra.mxu0 0.0
        %724 = vmatprep.subr.mxu0 0.0
        %725 = vmatpush2.msra.mxu0 0.0
        %726 = vmatprep.subr.mxu0 0.0
        %727 = vmatpush2.msra.mxu0 0.0
        %728 = vmatprep.subr.mxu0 0.0
        %729 = vmatpush2.msra.mxu0 0.0
        %730 = vmatprep.subr.mxu0 0.0
        %731 = vmatpush2.msra.mxu0 0.0
        %732 = vmatprep.subr.mxu0 0.0
        %733 = vmatpush2.msra.mxu0 0.0
        %734 = vmatprep.subr.mxu0 0.0
        %735 = vmatpush2.msra.mxu0 0.0
        %736 = vmatprep.subr.mxu0 0.0
        %737 = vmatpush2.msra.mxu0 0.0
        %738 = vmatprep.subr.mxu0 0.0
        %739 = vmatpush2.msra.mxu0 0.0
        %740 = vmatprep.subr.mxu0 0.0
        %741 = vmatpush2.msra.mxu0 0.0
        %742 = vmatprep.subr.mxu0 0.0
        %743 = vmatpush2.msra.mxu0 0.0
        %744 = vmatprep.subr.mxu0 0.0
        %745 = vmatpush2.msra.mxu0 0.0
        %746 = vmatprep.subr.mxu0 0.0
        %747 = vmatpush2.msra.mxu0 0.0
        %748 = vmatprep.subr.mxu0 0.0
        %749 = vmatpush2.msra.mxu0 0.0
        %750 = vmatprep.subr.mxu0 0.0
        %751 = vmatpush2.msra.mxu0 0.0
        %752 = vmatprep.subr.mxu0 0.0
        %753 = vmatpush2.msra.mxu0 0.0
        %754 = vmatprep.mubr.f32.mxu0 0.0
        %755 = vmatmul.mubr.f32.gmra.mxu0 %v688
        %v756 = vpop.f32.mrf.mxu0
        %v757 = vadd.f32 %v684, %v756
        %v758 = vpop.f32.mrf.mxu0
        %v759 = vadd.f32 %v684, %v758
        %760 = vdwg.mxu0
        %vm761 = vcmp.gt.f32.partialorder %v757, 0.0
        %vm762 = vcmp.gt.f32.partialorder %v759, 0.0
        %v763 = vmul.f32 %v757, 0.2
        %v764 = vmul.f32 %v759, 0.2
        %v765 = vsel %vm761, %v757, %v763
        %v766 = vsel %vm762, %v759, %v764
        %767 = vrot.lane.b32.xlu0 %v765, 17
        %v768 = vpop.permute.xlu0 %767
        %769 = vrot.lane.b32.xlu0 %v766, 17
        %v770 = vpop.permute.xlu0 %769
        %v771 = vsel %vm511, %v768, %v770
        %v772 = vsel %vm511, %v770, %v768
        %v773 = vmul.f32 %v772, %v517
        %v774 = vmul.f32 %v771, %v521
        %775 = vst [vmem:[#allocation2] sm:$0xff] %v773
        %776 = vst [vmem:[#allocation2 + $0x8] sm:$0xff] %v774
        %777 = vrot.lane.b32.xlu0 %v765, 16
        %v778 = vpop.permute.xlu0 %777
        %779 = vrot.lane.b32.xlu0 %v766, 16
        %v780 = vpop.permute.xlu0 %779
        %v781 = vsel %vm530, %v778, %v780
        %v782 = vsel %vm530, %v780, %v778
        %v783 = vmul.f32 %v782, %v536
        %v784 = vmul.f32 %v781, %v540
        %785 = vst [vmem:[#allocation2 + $0x10] sm:$0xff] %v783
        %786 = vst [vmem:[#allocation2 + $0x18] sm:$0xff] %v784
        %787 = vrot.lane.b32.xlu0 %v765, 15
        %v788 = vpop.permute.xlu0 %787
        %789 = vrot.lane.b32.xlu0 %v766, 15
        %v790 = vpop.permute.xlu0 %789
        %v791 = vsel %vm549, %v788, %v790
        %v792 = vsel %vm549, %v790, %v788
        %v793 = vmul.f32 %v792, %v555
        %v794 = vmul.f32 %v791, %v559
        %795 = vst [vmem:[#allocation2 + $0x20] sm:$0xff] %v793
        %796 = vst [vmem:[#allocation2 + $0x28] sm:$0xff] %v794
        %797 = vrot.lane.b32.xlu0 %v765, 1
        %v798 = vpop.permute.xlu0 %797
        %799 = vrot.lane.b32.xlu0 %v766, 1
        %v800 = vpop.permute.xlu0 %799
        %v801 = vsel %vm568, %v798, %v800
        %v802 = vsel %vm568, %v800, %v798
        %v803 = vmul.f32 %v802, %v574
        %v804 = vmul.f32 %v801, %v578
        %805 = vst [vmem:[#allocation2 + $0x30] sm:$0xff] %v803
        %806 = vst [vmem:[#allocation2 + $0x38] sm:$0xff] %v804
        %807 = vst [vmem:[#allocation2 + $0x40] sm:$0xff] %v765
        %808 = vst [vmem:[#allocation2 + $0x48] sm:$0xff] %v766
        %809 = vrot.lane.b32.xlu0 %v765, 127
        %v810 = vpop.permute.xlu0 %809
        %811 = vrot.lane.b32.xlu0 %v766, 127
        %v812 = vpop.permute.xlu0 %811
        %v813 = vsel %vm589, %v810, %v812
        %v814 = vsel %vm589, %v812, %v810
        %v815 = vmul.f32 %v813, %v595
        %v816 = vmul.f32 %v814, %v599
        %817 = vst [vmem:[#allocation2 + $0x50] sm:$0xff] %v815
        %818 = vst [vmem:[#allocation2 + $0x58] sm:$0xff] %v816
        %819 = vrot.lane.b32.xlu0 %v765, 113
        %v820 = vpop.permute.xlu0 %819
        %821 = vrot.lane.b32.xlu0 %v766, 113
        %v822 = vpop.permute.xlu0 %821
        %v823 = vsel %vm608, %v820, %v822
        %v824 = vsel %vm608, %v822, %v820
        %v825 = vmul.f32 %v823, %v614
        %v826 = vmul.f32 %v824, %v618
        %827 = vst [vmem:[#allocation2 + $0x60] sm:$0xff] %v825
        %828 = vst [vmem:[#allocation2 + $0x68] sm:$0xff] %v826
        %829 = vrot.lane.b32.xlu0 %v765, 112
        %v830 = vpop.permute.xlu0 %829
        %831 = vrot.lane.b32.xlu0 %v766, 112
        %v832 = vpop.permute.xlu0 %831
        %v833 = vsel %vm627, %v830, %v832
        %v834 = vsel %vm627, %v832, %v830
        %v835 = vmul.f32 %v833, %v633
        %v836 = vmul.f32 %v834, %v637
        %837 = vst [vmem:[#allocation2 + $0x70] sm:$0xff] %v835
        %838 = vst [vmem:[#allocation2 + $0x78] sm:$0xff] %v836
        %839 = vrot.lane.b32.xlu0 %v765, 111
        %v840 = vpop.permute.xlu0 %839
        %841 = vrot.lane.b32.xlu0 %v766, 111
        %v842 = vpop.permute.xlu0 %841
        %v843 = vsel %vm646, %v840, %v842
        %v844 = vsel %vm646, %v842, %v840
        %v845 = vmul.f32 %v843, %v652
        %v846 = vmul.f32 %v844, %v656
        %847 = vst [vmem:[#allocation2 + $0x80] sm:$0xff] %v845
        %848 = vst [vmem:[#allocation2 + $0x88] sm:$0xff] %v846
        %v849 = vld [vmem:[#allocation2] sm:$0xff]
        %v850 = vld [vmem:[#allocation2 + $0x8] sm:$0xff]
        %v851 = vld [vmem:[#allocation2 + $0x10] sm:$0xff]
        %v852 = vld [vmem:[#allocation2 + $0x18] sm:$0xff]
        %v853 = vld [vmem:[#allocation2 + $0x20] sm:$0xff]
        %v854 = vld [vmem:[#allocation2 + $0x28] sm:$0xff]
        %v855 = vld [vmem:[#allocation2 + $0x30] sm:$0xff]
        %v856 = vld [vmem:[#allocation2 + $0x38] sm:$0xff]
        %v857 = vld [vmem:[#allocation2 + $0x40] sm:$0xff]
        %v858 = vld [vmem:[#allocation2 + $0x48] sm:$0xff]
        %v859 = vld [vmem:[#allocation2 + $0x50] sm:$0xff]
        %v860 = vld [vmem:[#allocation2 + $0x58] sm:$0xff]
        %v861 = vld [vmem:[#allocation2 + $0x60] sm:$0xff]
        %v862 = vld [vmem:[#allocation2 + $0x68] sm:$0xff]
        %v863 = vld [vmem:[#allocation2 + $0x70] sm:$0xff]
        %v864 = vld [vmem:[#allocation2 + $0x78] sm:$0xff]
        %v865 = vld [vmem:[#allocation2 + $0x80] sm:$0xff]
        %v866 = vld [vmem:[#allocation2 + $0x88] sm:$0xff]
        %v867 = vld [vmem:[#allocation8] sm:$0xff]
        %v868 = vld [vmem:[%s6] sm:$0xff]
        %870 = vset.pattern.permute.xlu0 0
        %871 = vperm.xlu0 %870, %v868
        %v872 = vpop.permute.xlu0 %871
        %v875 = vsel %vm686, %v867, 0
        %877 = vmatprep.subr.mxu0 0.0
        %878 = vmatpush1.msra.mxu0 0.0
        %879 = vmatprep.subr.mxu0 0.0
        %880 = vmatpush1.msra.mxu0 0.0
        %881 = vmatprep.subr.mxu0 0.0
        %882 = vmatpush1.msra.mxu0 0.0
        %883 = vmatprep.subr.mxu0 0.0
        %884 = vmatpush1.msra.mxu0 0.0
        %885 = vmatprep.subr.mxu0 0.0
        %886 = vmatpush1.msra.mxu0 0.0
        %887 = vmatprep.subr.mxu0 0.0
        %888 = vmatpush1.msra.mxu0 0.0
        %889 = vmatprep.subr.mxu0 0.0
        %890 = vmatpush1.msra.mxu0 0.0
        %891 = vmatprep.subr.mxu0 %v866
        %892 = vmatpush1.msra.mxu0 %v865
        %893 = vmatprep.subr.mxu0 %v864
        %894 = vmatpush1.msra.mxu0 %v863
        %895 = vmatprep.subr.mxu0 %v862
        %896 = vmatpush1.msra.mxu0 %v861
        %897 = vmatprep.subr.mxu0 %v860
        %898 = vmatpush1.msra.mxu0 %v859
        %899 = vmatprep.subr.mxu0 %v858
        %900 = vmatpush1.msra.mxu0 %v857
        %901 = vmatprep.subr.mxu0 %v856
        %902 = vmatpush1.msra.mxu0 %v855
        %903 = vmatprep.subr.mxu0 %v854
        %904 = vmatpush1.msra.mxu0 %v853
        %905 = vmatprep.subr.mxu0 %v852
        %906 = vmatpush1.msra.mxu0 %v851
        %907 = vmatprep.subr.mxu0 %v850
        %908 = vmatpush1.msra.mxu0 %v849
        %909 = vmatprep.subr.mxu0 0.0
        %910 = vmatpush2.msra.mxu0 0.0
        %911 = vmatprep.subr.mxu0 0.0
        %912 = vmatpush2.msra.mxu0 0.0
        %913 = vmatprep.subr.mxu0 0.0
        %914 = vmatpush2.msra.mxu0 0.0
        %915 = vmatprep.subr.mxu0 0.0
        %916 = vmatpush2.msra.mxu0 0.0
        %917 = vmatprep.subr.mxu0 0.0
        %918 = vmatpush2.msra.mxu0 0.0
        %919 = vmatprep.subr.mxu0 0.0
        %920 = vmatpush2.msra.mxu0 0.0
        %921 = vmatprep.subr.mxu0 0.0
        %922 = vmatpush2.msra.mxu0 0.0
        %923 = vmatprep.subr.mxu0 0.0
        %924 = vmatpush2.msra.mxu0 0.0
        %925 = vmatprep.subr.mxu0 0.0
        %926 = vmatpush2.msra.mxu0 0.0
        %927 = vmatprep.subr.mxu0 0.0
        %928 = vmatpush2.msra.mxu0 0.0
        %929 = vmatprep.subr.mxu0 0.0
        %930 = vmatpush2.msra.mxu0 0.0
        %931 = vmatprep.subr.mxu0 0.0
        %932 = vmatpush2.msra.mxu0 0.0
        %933 = vmatprep.subr.mxu0 0.0
        %934 = vmatpush2.msra.mxu0 0.0
        %935 = vmatprep.subr.mxu0 0.0
        %936 = vmatpush2.msra.mxu0 0.0
        %937 = vmatprep.subr.mxu0 0.0
        %938 = vmatpush2.msra.mxu0 0.0
        %939 = vmatprep.subr.mxu0 0.0
        %940 = vmatpush2.msra.mxu0 0.0
        %941 = vmatprep.mubr.f32.mxu0 0.0
        %942 = vmatmul.mubr.f32.gmra.mxu0 %v875
        %v943 = vpop.f32.mrf.mxu0
        %v944 = vadd.f32 %v872, %v943
        %v945 = vpop.f32.mrf.mxu0
        %v946 = vadd.f32 %v872, %v945
        %947 = vdwg.mxu0
        %v948 = vld [vmem:[%s7] sm:$0xff]
        %v949 = vld [vmem:[%s8] sm:$0xff]
        %951 = vset.pattern.permute.xlu0 0
        %952 = vperm.xlu0 %951, %v949
        %v953 = vpop.permute.xlu0 %952
        %vm955 = vcmask 64512
        %v957 = vsel %vm955, %v948, 0
        %959 = vmatprep.subr.mxu0 0.0
        %960 = vmatpush1.msra.mxu0 0.0
        %961 = vmatprep.subr.mxu0 0.0
        %962 = vmatpush1.msra.mxu0 0.0
        %963 = vmatprep.subr.mxu0 0.0
        %964 = vmatpush1.msra.mxu0 0.0
        %965 = vmatprep.subr.mxu0 0.0
        %966 = vmatpush1.msra.mxu0 0.0
        %967 = vmatprep.subr.mxu0 0.0
        %968 = vmatpush1.msra.mxu0 0.0
        %969 = vmatprep.subr.mxu0 0.0
        %970 = vmatpush1.msra.mxu0 0.0
        %971 = vmatprep.subr.mxu0 0.0
        %972 = vmatpush1.msra.mxu0 0.0
        %973 = vmatprep.subr.mxu0 0.0
        %974 = vmatpush1.msra.mxu0 0.0
        %975 = vmatprep.subr.mxu0 0.0
        %976 = vmatpush1.msra.mxu0 0.0
        %977 = vmatprep.subr.mxu0 0.0
        %978 = vmatpush1.msra.mxu0 0.0
        %979 = vmatprep.subr.mxu0 0.0
        %980 = vmatpush1.msra.mxu0 0.0
        %981 = vmatprep.subr.mxu0 0.0
        %982 = vmatpush1.msra.mxu0 0.0
        %983 = vmatprep.subr.mxu0 0.0
        %984 = vmatpush1.msra.mxu0 0.0
        %985 = vmatprep.subr.mxu0 0.0
        %986 = vmatpush1.msra.mxu0 0.0
        %987 = vmatprep.subr.mxu0 0.0
        %988 = vmatpush1.msra.mxu0 0.0
        %989 = vmatprep.subr.mxu0 %v502
        %990 = vmatpush1.msra.mxu0 %v501
        %991 = vmatprep.subr.mxu0 0.0
        %992 = vmatpush2.msra.mxu0 0.0
        %993 = vmatprep.subr.mxu0 0.0
        %994 = vmatpush2.msra.mxu0 0.0
        %995 = vmatprep.subr.mxu0 0.0
        %996 = vmatpush2.msra.mxu0 0.0
        %997 = vmatprep.subr.mxu0 0.0
        %998 = vmatpush2.msra.mxu0 0.0
        %999 = vmatprep.subr.mxu0 0.0
        %1000 = vmatpush2.msra.mxu0 0.0
        %1001 = vmatprep.subr.mxu0 0.0
        %1002 = vmatpush2.msra.mxu0 0.0
        %1003 = vmatprep.subr.mxu0 0.0
        %1004 = vmatpush2.msra.mxu0 0.0
        %1005 = vmatprep.subr.mxu0 0.0
        %1006 = vmatpush2.msra.mxu0 0.0
        %1007 = vmatprep.subr.mxu0 0.0
        %1008 = vmatpush2.msra.mxu0 0.0
        %1009 = vmatprep.subr.mxu0 0.0
        %1010 = vmatpush2.msra.mxu0 0.0
        %1011 = vmatprep.subr.mxu0 0.0
        %1012 = vmatpush2.msra.mxu0 0.0
        %1013 = vmatprep.subr.mxu0 0.0
        %1014 = vmatpush2.msra.mxu0 0.0
        %1015 = vmatprep.subr.mxu0 0.0
        %1016 = vmatpush2.msra.mxu0 0.0
        %1017 = vmatprep.subr.mxu0 0.0
        %1018 = vmatpush2.msra.mxu0 0.0
        %1019 = vmatprep.subr.mxu0 0.0
        %1020 = vmatpush2.msra.mxu0 0.0
        %1021 = vmatprep.subr.mxu0 0.0
        %1022 = vmatpush2.msra.mxu0 0.0
        %1023 = vmatprep.mubr.f32.mxu0 0.0
        %1024 = vmatmul.mubr.f32.gmra.mxu0 %v957
        %v1025 = vpop.f32.mrf.mxu0
        %v1026 = vadd.f32 %v953, %v1025
        %v1027 = vpop.f32.mrf.mxu0
        %v1028 = vadd.f32 %v953, %v1027
        %1029 = vdwg.mxu0
        %vm1030 = vcmp.gt.f32.partialorder %v1026, 0.0
        %vm1031 = vcmp.gt.f32.partialorder %v1028, 0.0
        %v1032 = vmul.f32 %v1026, 0.2
        %v1033 = vmul.f32 %v1028, 0.2
        %v1034 = vsel %vm1030, %v1026, %v1032
        %v1035 = vsel %vm1031, %v1028, %v1033
        %v1036 = vld [vmem:[#allocation9] sm:$0xff]
        %v1037 = vld [vmem:[%s10] sm:$0xff]
        %1039 = vset.pattern.permute.xlu0 0
        %1040 = vperm.xlu0 %1039, %v1037
        %v1041 = vpop.permute.xlu0 %1040
        %v1044 = vsel %vm955, %v1036, 0
        %1046 = vmatprep.subr.mxu0 0.0
        %1047 = vmatpush1.msra.mxu0 0.0
        %1048 = vmatprep.subr.mxu0 0.0
        %1049 = vmatpush1.msra.mxu0 0.0
        %1050 = vmatprep.subr.mxu0 0.0
        %1051 = vmatpush1.msra.mxu0 0.0
        %1052 = vmatprep.subr.mxu0 0.0
        %1053 = vmatpush1.msra.mxu0 0.0
        %1054 = vmatprep.subr.mxu0 0.0
        %1055 = vmatpush1.msra.mxu0 0.0
        %1056 = vmatprep.subr.mxu0 0.0
        %1057 = vmatpush1.msra.mxu0 0.0
        %1058 = vmatprep.subr.mxu0 0.0
        %1059 = vmatpush1.msra.mxu0 0.0
        %1060 = vmatprep.subr.mxu0 0.0
        %1061 = vmatpush1.msra.mxu0 0.0
        %1062 = vmatprep.subr.mxu0 0.0
        %1063 = vmatpush1.msra.mxu0 0.0
        %1064 = vmatprep.subr.mxu0 0.0
        %1065 = vmatpush1.msra.mxu0 0.0
        %1066 = vmatprep.subr.mxu0 0.0
        %1067 = vmatpush1.msra.mxu0 0.0
        %1068 = vmatprep.subr.mxu0 0.0
        %1069 = vmatpush1.msra.mxu0 0.0
        %1070 = vmatprep.subr.mxu0 0.0
        %1071 = vmatpush1.msra.mxu0 0.0
        %1072 = vmatprep.subr.mxu0 0.0
        %1073 = vmatpush1.msra.mxu0 0.0
        %1074 = vmatprep.subr.mxu0 0.0
        %1075 = vmatpush1.msra.mxu0 0.0
        %1076 = vmatprep.subr.mxu0 %v1035
        %1077 = vmatpush1.msra.mxu0 %v1034
        %1078 = vmatprep.subr.mxu0 0.0
        %1079 = vmatpush2.msra.mxu0 0.0
        %1080 = vmatprep.subr.mxu0 0.0
        %1081 = vmatpush2.msra.mxu0 0.0
        %1082 = vmatprep.subr.mxu0 0.0
        %1083 = vmatpush2.msra.mxu0 0.0
        %1084 = vmatprep.subr.mxu0 0.0
        %1085 = vmatpush2.msra.mxu0 0.0
        %1086 = vmatprep.subr.mxu0 0.0
        %1087 = vmatpush2.msra.mxu0 0.0
        %1088 = vmatprep.subr.mxu0 0.0
        %1089 = vmatpush2.msra.mxu0 0.0
        %1090 = vmatprep.subr.mxu0 0.0
        %1091 = vmatpush2.msra.mxu0 0.0
        %1092 = vmatprep.subr.mxu0 0.0
        %1093 = vmatpush2.msra.mxu0 0.0
        %1094 = vmatprep.subr.mxu0 0.0
        %1095 = vmatpush2.msra.mxu0 0.0
        %1096 = vmatprep.subr.mxu0 0.0
        %1097 = vmatpush2.msra.mxu0 0.0
        %1098 = vmatprep.subr.mxu0 0.0
        %1099 = vmatpush2.msra.mxu0 0.0
        %1100 = vmatprep.subr.mxu0 0.0
        %1101 = vmatpush2.msra.mxu0 0.0
        %1102 = vmatprep.subr.mxu0 0.0
        %1103 = vmatpush2.msra.mxu0 0.0
        %1104 = vmatprep.subr.mxu0 0.0
        %1105 = vmatpush2.msra.mxu0 0.0
        %1106 = vmatprep.subr.mxu0 0.0
        %1107 = vmatpush2.msra.mxu0 0.0
        %1108 = vmatprep.subr.mxu0 0.0
        %1109 = vmatpush2.msra.mxu0 0.0
        %1110 = vmatprep.mubr.f32.mxu0 0.0
        %1111 = vmatmul.mubr.f32.gmra.mxu0 %v1044
        %v1112 = vpop.f32.mrf.mxu0
        %v1113 = vadd.f32 %v1041, %v1112
        %v1114 = vpop.f32.mrf.mxu0
        %v1115 = vadd.f32 %v1041, %v1114
        %1116 = vdwg.mxu0
        %v1117 = vmul.f32 %v944, %v1113
        %v1118 = vmul.f32 %v946, %v1115
        %v1119 = vadd.f32 %v499, %v1117
        %v1120 = vadd.f32 %v500, %v1118
        %1121 = vst [vmem:[%s486] sm:$0xff] %v1119
        %1122 = vst [vmem:[%s486 + $0x8] sm:$0xff] %v1120
        %v1123 = vadd.f32 %v501, %v1113
        %v1124 = vadd.f32 %v502, %v1115
        %1125 = vst [vmem:[%s493] sm:$0xff] %v1123
        %1126 = vst [vmem:[%s493 + $0x8] sm:$0xff] %v1124
        %s1127 = sand.u32 %s284, 1
        %s1128 = scalar_lea.sflag [#allocation5], %s1127
        %s1129 = sand.u32 %s284, 1
        %s1130 = smul.addr %s1129, 16
        %s1131 = scalar_lea.vmem [#allocation11], %s1130
        %s1132 = sand.u32 %s310, 1
        %s1133 = scalar_lea.sflag [#allocation13], %s1132
        %s1134 = sand.u32 %s310, 1
        %s1135 = smul.addr %s1134, 16
        %s1136 = scalar_lea.vmem [#allocation12], %s1135
        // Predicated region
        $region81: #{tpu_custom_call.1} parent=63 // pred_check
          %p1137 = pneg %p294
        $region82: #{tpu_custom_call.1} parent=63 // pred_check_branch
          %1139 = sbr.rel (%p1137) target = $region84
        $region83: #{tpu_custom_call.1} parent=63 // pred_region
          %s1141 = ssub.s32 256, 256
          %1142 = vsyncadd %s1128, %s1141
          %s1143 = smul.addr %s35, 2
          %s1144 = smul.addr %s1143, 128
          %s1145 = scalar_lea.hbm %s11, %s1144
          %s1147 = sshll.u32 %s1131, 4
          %s1148 = int_to_ptr.vmem [resolvable:$true] %s1147
          %1150 = dma.vmem_to_hbm [thread:$0]  %s1148, 256, %s1145, %s1128
        $region84: #{tpu_custom_call.1} parent=63 // pred_fallthru
          _
        // Predicated region
        $region85: #{tpu_custom_call.1} parent=63 // pred_check
          %p1151 = pneg %p320
        $region86: #{tpu_custom_call.1} parent=63 // pred_check_branch
          %1153 = sbr.rel (%p1151) target = $region88
        $region87: #{tpu_custom_call.1} parent=63 // pred_region
          %s1155 = ssub.s32 256, 256
          %1156 = vsyncadd %s1133, %s1155
          %s1157 = smul.addr %s35, 2
          %s1158 = smul.addr %s1157, 128
          %s1159 = scalar_lea.hbm %s12, %s1158
          %s1161 = sshll.u32 %s1136, 4
          %s1162 = int_to_ptr.vmem [resolvable:$true] %s1161
          %1164 = dma.vmem_to_hbm [thread:$0]  %s1162, 256, %s1159, %s1133
        $region88: #{tpu_custom_call.1} parent=63 // pred_fallthru
          _
      $region64: #{tpu_custom_call.1} parent=5 // pred_fallthru
        _
      %p1165 = scmp.le.s32.totalorder 2, %s30
      // Predicated region
      $region89: #{tpu_custom_call.1} parent=5 // pred_check
        %p1166 = pneg %p1165
      $region90: #{tpu_custom_call.1} parent=5 // pred_check_branch
        %1168 = sbr.rel (%p1166) target = $region92
      $region91: #{tpu_custom_call.1} parent=5 // pred_region
        %s1169 = ssub.s32 %s30, 2
        // Predicated region
        $region93: #{tpu_custom_call.1} parent=91 // pred_check
          %p1170 = pneg %p300
        $region94: #{tpu_custom_call.1} parent=91 // pred_check_branch
          %1172 = sbr.rel (%p1170) target = $region96
        $region95: #{tpu_custom_call.1} parent=91 // pred_region
          %s1173 = sand.u32 %s285, 1
          %s1174 = scalar_lea.sflag [#allocation5], %s1173
          %s1175 = sand.u32 %s285, 1
          %s1176 = smul.addr %s1175, 16
          %s1177 = scalar_lea.vmem [#allocation11], %s1176
          %1178 = dma.done %s1174, 256
        $region96: #{tpu_custom_call.1} parent=91 // pred_fallthru
          _
        // Predicated region
        $region97: #{tpu_custom_call.1} parent=91 // pred_check
          %p1179 = pneg %p326
        $region98: #{tpu_custom_call.1} parent=91 // pred_check_branch
          %1181 = sbr.rel (%p1179) target = $region100
        $region99: #{tpu_custom_call.1} parent=91 // pred_region
          %s1182 = sand.u32 %s311, 1
          %s1183 = scalar_lea.sflag [#allocation13], %s1182
          %s1184 = sand.u32 %s311, 1
          %s1185 = smul.addr %s1184, 16
          %s1186 = scalar_lea.vmem [#allocation12], %s1185
          %1187 = dma.done %s1183, 256
        $region100: #{tpu_custom_call.1} parent=91 // pred_fallthru
          _
      $region92: #{tpu_custom_call.1} parent=5 // pred_fallthru
        _
    $region6: #{tpu_custom_call.1} parent=1 // loop_footer
      %s34 = sadd.s32 1, %s30
    $region7: #{tpu_custom_call.1} parent=1 // loop_footer_branch
      %29 = sbr.rel target = $region3
    $region8: #{tpu_custom_call.1} parent=1 // loop_exit
      _
    %1188 = vsyncpa [#allocation4], 1
    %s1189 = scalar_lea.sflag [#allocation4], 1
    %1190 = vsyncpa %s1189, 1
    %1191 = vsyncpa [#allocation7], 1
    %1192 = vsyncpa [#allocation10], 1
    %1193 = vsyncpa [#allocation5], 1
    %s1194 = scalar_lea.sflag [#allocation5], 1
    %1195 = vsyncpa %s1194, 1
    %1196 = vsyncpa [#allocation13], 1
    %s1197 = scalar_lea.sflag [#allocation13], 1
    %1198 = vsyncpa %s1197, 1

</llo_original>
